<compile_context>
chip_gen: v7x
topology: tpu7x:2x2x1
jax: 0.10.0
libtpu: 0.0.40
codegen_flags: <defaults>
</compile_context>

<pallas_src>
import numpy as np
import jax
import jax.numpy as jnp
from jax.experimental import pallas as pl
from jax.experimental.pallas import tpu as pltpu

# ----------------------------- configuration -------------------------------
B = 2                     # batch
H_RES, W_RES = 8, 8       # input_resolution
C = 32                    # dim
NUM_HEADS = 4
HEAD_DIM = C // NUM_HEADS
WS = 4                    # window_size
SS = 2                    # shift_size (exercises the masked / shifted path)
MLP_RATIO = 4.0
HID = int(C * MLP_RATIO)  # mlp hidden dim (=128, lane-dense)
N = WS * WS               # tokens per window (16)
NW = (H_RES // WS) * (W_RES // WS)  # windows per image (4)
NWIN = B * NW             # total windows (8)
L = H_RES * W_RES         # tokens per image (64)
TOK = B * L               # total tokens (128)
EPS = 1e-5
SCALE = HEAD_DIM ** -0.5
NEG = -1e9                # cross-window mask value (exp underflows to exact 0)

# offsets into the packed per-channel column-vector array (416 rows total)
V_LN1G = 0
V_LN1B = V_LN1G + C        # 32
V_QKVB = V_LN1B + C        # 64   (3C rows)
V_PROJB = V_QKVB + 3 * C   # 160
V_LN2G = V_PROJB + C       # 192
V_LN2B = V_LN2G + C        # 224
V_FC1B = V_LN2B + C        # 256  (HID rows)
V_FC2B = V_FC1B + HID      # 384
V_TOTAL = V_FC2B + C       # 416


# ----------------------------- small helpers -------------------------------
def _gelu_exact(x):
    """torch.nn.GELU default (erf formulation), A&S 7.1.26 polynomial.
    The 1/(1+p*|x|) divide goes to the EUP via approx reciprocal."""
    a1, a2, a3, a4, a5 = (0.254829592, -0.284496736, 1.421413741,
                          -1.453152027, 1.061405429)
    p = 0.3275911
    inv_sqrt2 = 0.7071067811865476
    ax = jnp.abs(x) * inv_sqrt2
    t = pl.reciprocal(1.0 + p * ax, approx=True)
    poly = ((((a5 * t + a4) * t + a3) * t + a2) * t + a1) * t
    erf_ax = 1.0 - poly * jnp.exp(-ax * ax)          # erf(|x|/sqrt(2))
    cdf = 0.5 * (1.0 + jnp.where(x >= 0, erf_ax, -erf_ax))
    return x * cdf


def _layernorm_ch(x, gamma, beta):
    # x: (C, TOK); normalize over channels (axis 0), i.e. per token.
    mu = jnp.mean(x, axis=0, keepdims=True)
    var = jnp.mean(jnp.square(x - mu), axis=0, keepdims=True)
    return (x - mu) * jax.lax.rsqrt(var + EPS) * gamma + beta


# ------------------------------ Pallas kernel -------------------------------
def swin_fused_kernel(xT_ref, vecs_ref, qkvw_ref, projw_ref, bias_ref,
                      w1_ref, w2_ref, o_ref, qkv_scr, ho_scr):
    xT = xT_ref[...]                                           # (C, TOK) f32

    # ---- LayerNorm1 (channels on sublanes, tokens on lanes) ----
    xn = _layernorm_ch(xT,
                       vecs_ref[pl.ds(V_LN1G, C), :],
                       vecs_ref[pl.ds(V_LN1B, C), :]).astype(jnp.bfloat16)

    # ---- batched QKV projection (scale already folded into q rows) ----
    qkv = jnp.dot(qkvw_ref[...], xn,
                  preferred_element_type=jnp.float32)          # (3C, TOK) f32
    qkv = qkv + vecs_ref[pl.ds(V_QKVB, 3 * C), :]
    # park in VMEM scratch: blocks 0..3 = q heads, 4..7 = k heads, 8..11 = v.
    qkv_scr[...] = qkv.reshape(3 * NUM_HEADS, HEAD_DIM, TOK)

    # ---- per-head attention; pl.loop bounds per-head vreg live ranges ----
    @pl.loop(0, NUM_HEADS)
    def _(h):
        q = qkv_scr[h].astype(jnp.bfloat16)                    # (HD, TOK)
        k = qkv_scr[NUM_HEADS + h].astype(jnp.bfloat16)        # (HD, TOK)
        v = qkv_scr[2 * NUM_HEADS + h].astype(jnp.bfloat16)    # (HD, TOK)

        # full (query, key) scores; cross-window / cross-batch pairs are
        # killed by the -1e9 entries baked into bias_ref (softmax weight 0).
        s = jax.lax.dot_general(q, k, (((0,), (0,)), ((), ())),
                                preferred_element_type=jnp.float32)  # (TOK,TOK)
        s = s + bias_ref[h]                                    # bf16 -> f32 add
        s = s - jnp.max(s, axis=-1, keepdims=True)
        e = jnp.exp(s)
        inv = pl.reciprocal(jnp.sum(e, axis=-1, keepdims=True), approx=True)
        p = (e * inv).astype(jnp.bfloat16)                     # softmax (bf16 MXU operand)

        ho_scr[h] = jax.lax.dot_general(v, p, (((1,), (1,)), ((), ())),
                                        preferred_element_type=jnp.float32)

    # ---- single output projection over all heads (K = C = 32) ----
    heads = ho_scr[...].reshape(C, TOK).astype(jnp.bfloat16)   # sublane-stacked
    attnT = jnp.dot(projw_ref[...], heads,
                    preferred_element_type=jnp.float32)
    attnT = attnT + vecs_ref[pl.ds(V_PROJB, C), :]

    # ---- residual 1, LayerNorm2, MLP, residual 2 (all lane-dense) ----
    y = xT + attnT
    yn = _layernorm_ch(y,
                       vecs_ref[pl.ds(V_LN2G, C), :],
                       vecs_ref[pl.ds(V_LN2B, C), :]).astype(jnp.bfloat16)
    h1 = jnp.dot(w1_ref[...], yn,
                 preferred_element_type=jnp.float32)           # (HID, TOK)
    h1 = h1 + vecs_ref[pl.ds(V_FC1B, HID), :]
    h1 = _gelu_exact(h1).astype(jnp.bfloat16)
    mlp = jnp.dot(w2_ref[...], h1,
                  preferred_element_type=jnp.float32)          # (C, TOK)
    mlp = mlp + vecs_ref[pl.ds(V_FC2B, C), :]
    o_ref[...] = y + mlp


def fused_swin_pallas(xT, pp):
    vmem = lambda: pl.BlockSpec(memory_space=pltpu.MemorySpace.VMEM)
    return pl.pallas_call(
        swin_fused_kernel,
        out_shape=jax.ShapeDtypeStruct((C, TOK), jnp.float32),
        in_specs=[vmem() for _ in range(7)],
        out_specs=vmem(),
        scratch_shapes=[
            pltpu.VMEM((3 * NUM_HEADS, HEAD_DIM, TOK), jnp.float32),  # qkv
            pltpu.VMEM((NUM_HEADS, HEAD_DIM, TOK), jnp.float32),      # head outs
        ],
        cost_estimate=pl.CostEstimate(flops=10_000_000,
                                      transcendentals=82_000,
                                      bytes_accessed=230_000),
    )(xT, pp["vecs"], pp["qkv_wT"], pp["proj_wT"], pp["bias"],
      pp["fc1_wT"], pp["fc2_wT"])


# ------------------------------ host-side setup ------------------------------
def make_relative_position_index(ws):
    coords = np.stack(np.meshgrid(np.arange(ws), np.arange(ws), indexing="ij"))
    coords_flat = coords.reshape(2, -1)
    rel = coords_flat[:, :, None] - coords_flat[:, None, :]
    rel = rel.transpose(1, 2, 0).astype(np.int64)
    rel[:, :, 0] += ws - 1
    rel[:, :, 1] += ws - 1
    rel[:, :, 0] *= 2 * ws - 1
    return rel.sum(-1).astype(np.int32)      # (N, N)


def make_attn_mask():
    if SS == 0:
        return np.zeros((NW, N, N), np.float32)
    img_mask = np.zeros((1, H_RES, W_RES, 1), np.float32)
    h_slices = (slice(0, -WS), slice(-WS, -SS), slice(-SS, None))
    w_slices = (slice(0, -WS), slice(-WS, -SS), slice(-SS, None))
    cnt = 0
    for hs in h_slices:
        for ws_ in w_slices:
            img_mask[:, hs, ws_, :] = cnt
            cnt += 1
    mw = img_mask.reshape(1, H_RES // WS, WS, W_RES // WS, WS, 1)
    mw = mw.transpose(0, 1, 3, 2, 4, 5).reshape(-1, N)
    diff = mw[:, None, :] - mw[:, :, None]
    return np.where(diff != 0, -100.0, 0.0).astype(np.float32)


def build_token_perm():
    """perm[t_window_order] = original flat token index (incl. cyclic shift)."""
    wpr = W_RES // WS
    perm = np.empty((B, H_RES // WS, wpr, WS, WS), np.int32)
    for b in range(B):
        for wh in range(H_RES // WS):
            for ww in range(wpr):
                for i in range(WS):
                    for j in range(WS):
                        h0 = (wh * WS + i + SS) % H_RES
                        w0 = (ww * WS + j + SS) % W_RES
                        perm[b, wh, ww, i, j] = b * L + h0 * W_RES + w0
    perm = perm.reshape(-1)
    inv = np.empty_like(perm)
    inv[perm] = np.arange(perm.size, dtype=np.int32)
    return perm, inv


def init_params(key):
    ks = jax.random.split(key, 7)
    w = lambda k, s: (0.02 * jax.random.normal(k, s)).astype(jnp.float32)
    return {
        "ln1_g": jnp.ones((C,), jnp.float32),
        "ln1_b": jnp.zeros((C,), jnp.float32),
        "qkv_w": w(ks[0], (C, 3 * C)),        # [in, out]
        "qkv_b": w(ks[1], (3 * C,)),
        "proj_w": w(ks[2], (C, C)),           # [in, out]
        "proj_b": jnp.zeros((C,), jnp.float32),
        "rel_table": w(ks[3], ((2 * WS - 1) * (2 * WS - 1), NUM_HEADS)),
        "ln2_g": jnp.ones((C,), jnp.float32),
        "ln2_b": jnp.zeros((C,), jnp.float32),
        "fc1_w": w(ks[4], (C, HID)),          # [in, out]
        "fc1_b": w(ks[5], (HID,)),
        "fc2_w": w(ks[6], (HID, C)),          # [in, out]
        "fc2_b": jnp.zeros((C,), jnp.float32),
    }


def prepare_kernel_params(params, rel_index, attn_mask):
    """One-time prep: transposed bf16 weights, combined block-diagonal bias
    (rel-pos + shift mask + window mask) permuted into ORIGINAL token order,
    scale folded into q, and all per-channel vectors packed into one column."""
    # ---- combined bias in window order ----
    rel = params["rel_table"][jnp.asarray(rel_index.reshape(-1))]
    rel = jnp.transpose(rel.reshape(N, N, NUM_HEADS), (2, 0, 1))       # (H,N,N)
    small = rel[:, None, :, :] + jnp.asarray(attn_mask)[None]          # (H,NW,N,N)
    small = jnp.tile(small, (1, B, 1, 1))                              # (H,NWIN,N,N)
    eye = np.eye(NWIN, dtype=np.float32)
    placed = jnp.einsum("hwij,wv->hwivj", small, eye)                  # block-diag
    bias_w = placed + ((1.0 - eye) * NEG)[None, :, None, :, None]
    bias_w = bias_w.reshape(NUM_HEADS, TOK, TOK)

    # ---- bake the shifted-window permutation into the bias so the wrapper
    #      needs no token gather / inverse gather ----
    _, inv_perm = build_token_perm()
    inv = jnp.asarray(inv_perm)
    bias = bias_w[:, inv, :][:, :, inv].astype(jnp.bfloat16)           # (H,TOK,TOK)

    # ---- fold attention scale into the q rows of the QKV projection ----
    qkv_wT = params["qkv_w"].T.at[:C].multiply(SCALE)                  # (3C, C)
    qkv_b = params["qkv_b"].at[:C].multiply(SCALE)                     # (3C,)

    # ---- pack all per-channel column vectors into one (416, 1) array ----
    vecs = jnp.concatenate([
        params["ln1_g"], params["ln1_b"], qkv_b, params["proj_b"],
        params["ln2_g"], params["ln2_b"], params["fc1_b"], params["fc2_b"],
    ]).astype(jnp.float32).reshape(V_TOTAL, 1)

    bf16 = lambda a: a.astype(jnp.bfloat16)
    return {
        "vecs": vecs,
        "bias": bias,
        "qkv_wT": bf16(qkv_wT),                  # (3C, C)
        "proj_wT": bf16(params["proj_w"].T),     # (C, C)
        "fc1_wT": bf16(params["fc1_w"].T),       # (HID, C)
        "fc2_wT": bf16(params["fc2_w"].T),       # (C, HID)
    }


def swin_block_forward(x, pp):
    # channel-major (tokens on lanes); window permutation lives in the bias.
    xT = x.reshape(TOK, C).T                    # (C, TOK)
    outT = fused_swin_pallas(xT, pp)            # (C, TOK)
    return outT.T.reshape(B, L, C)


# ------------------------- pure-JAX reference (torch mirror) -----------------
def _ln_lastdim(x, g, b):
    mu = jnp.mean(x, axis=-1, keepdims=True)
    var = jnp.mean(jnp.square(x - mu), axis=-1, keepdims=True)
    return (x - mu) * jax.lax.rsqrt(var + EPS) * g + b


def reference_forward(x, p, rel_index, attn_mask):
    shortcut = x
    xn = _ln_lastdim(x, p["ln1_g"], p["ln1_b"])
    xi = xn.reshape(B, H_RES, W_RES, C)
    if SS > 0:
        xi = jnp.roll(xi, shift=(-SS, -SS), axis=(1, 2))
    xw = xi.reshape(B, H_RES // WS, WS, W_RES // WS, WS, C)
    xw = xw.transpose(0, 1, 3, 2, 4, 5).reshape(NWIN, N, C)

    qkv = xw @ p["qkv_w"] + p["qkv_b"]
    qkv = qkv.reshape(NWIN, N, 3, NUM_HEADS, HEAD_DIM).transpose(2, 0, 3, 1, 4)
    q, k, v = qkv[0] * SCALE, qkv[1], qkv[2]             # (NWIN, H, N, HD)
    attn = jnp.einsum("whnd,whmd->whnm", q, k)
    rel = p["rel_table"][rel_index.reshape(-1)].reshape(N, N, NUM_HEADS)
    attn = attn + jnp.transpose(rel, (2, 0, 1))[None]
    attn = attn.reshape(B, NW, NUM_HEADS, N, N) + jnp.asarray(attn_mask)[None, :, None]
    attn = jax.nn.softmax(attn.reshape(NWIN, NUM_HEADS, N, N), axis=-1)
    ho = jnp.einsum("whnm,whmd->wnhd", attn, v).reshape(NWIN, N, C)
    aw = ho @ p["proj_w"] + p["proj_b"]

    aw = aw.reshape(B, H_RES // WS, W_RES // WS, WS, WS, C)
    aw = aw.transpose(0, 1, 3, 2, 4, 5).reshape(B, H_RES, W_RES, C)
    if SS > 0:
        aw = jnp.roll(aw, shift=(SS, SS), axis=(1, 2))
    y = shortcut + aw.reshape(B, L, C)

    yn = _ln_lastdim(y, p["ln2_g"], p["ln2_b"])
    h1 = jax.nn.gelu(yn @ p["fc1_w"] + p["fc1_b"], approximate=False)
    return y + h1 @ p["fc2_w"] + p["fc2_b"]


# --------------------------------- main --------------------------------------
if __name__ == "__main__":
    key = jax.random.PRNGKey(0)
    kx, kp = jax.random.split(key)

    x = jax.random.normal(kx, (B, L, C), dtype=jnp.float32)
    params = init_params(kp)
    rel_index = make_relative_position_index(WS)          # numpy constants
    attn_mask = make_attn_mask()
    prepped = prepare_kernel_params(params, rel_index, attn_mask)

    fwd = jax.jit(swin_block_forward)
    out = jax.block_until_ready(fwd(x, prepped))

    assert out.shape == (B, L, C), out.shape
    assert bool(jnp.all(jnp.isfinite(out)))

    # sanity check against a pure-JAX mirror of the PyTorch forward
    ref = reference_forward(x, params, rel_index, attn_mask)
    err = float(jnp.max(jnp.abs(out - ref)))
    assert err < 5e-3, f"max abs error vs reference: {err}"

    print("KERNEL_OK")
</pallas_src>

<mosaic_0001>
module attributes {stable_mosaic.version = 11 : i64} {
  func.func @swin_fused_kernel(%arg0: memref<32x128xf32, #tpu.memory_space<vmem>>, %arg1: memref<416x1xf32, #tpu.memory_space<vmem>>, %arg2: memref<96x32xbf16, #tpu.memory_space<vmem>>, %arg3: memref<32x32xbf16, #tpu.memory_space<vmem>>, %arg4: memref<4x128x128xbf16, #tpu.memory_space<vmem>>, %arg5: memref<128x32xbf16, #tpu.memory_space<vmem>>, %arg6: memref<32x128xbf16, #tpu.memory_space<vmem>>, %arg7: memref<32x128xf32, #tpu.memory_space<vmem>>, %arg8: memref<12x8x128xf32, #tpu.memory_space<vmem>>, %arg9: memref<4x8x128xf32, #tpu.memory_space<vmem>>) attributes {dimension_semantics = [], scalar_prefetch = 0 : i64, scratch_operands = 2 : i64, tpu.core_type = #tpu.core_type<tc>} {
    %c0 = arith.constant 0 : index
    %c0_0 = arith.constant 0 : index
    %0 = vector.load %arg0[%c0, %c0_0] : memref<32x128xf32, #tpu.memory_space<vmem>>, vector<32x128xf32>
    %c0_1 = arith.constant 0 : index
    %c0_2 = arith.constant 0 : index
    %1 = vector.load %arg1[%c0_1, %c0_2] : memref<416x1xf32, #tpu.memory_space<vmem>>, vector<32x1xf32>
    %c32 = arith.constant 32 : index
    %c0_3 = arith.constant 0 : index
    %2 = vector.load %arg1[%c32, %c0_3] : memref<416x1xf32, #tpu.memory_space<vmem>>, vector<32x1xf32>
    %cst = arith.constant dense<0.000000e+00> : vector<128xf32>
    %3 = vector.multi_reduction <add>, %0, %cst [0] : vector<32x128xf32> to vector<128xf32>
    %4 = vector.shape_cast %3 : vector<128xf32> to vector<1x128xf32>
    %cst_4 = arith.constant 3.200000e+01 : f32
    %5 = vector.broadcast %cst_4 : f32 to vector<1x128xf32>
    %6 = arith.divf %4, %5 : vector<1x128xf32>
    %7 = vector.broadcast %6 : vector<1x128xf32> to vector<32x128xf32>
    %8 = arith.subf %0, %7 : vector<32x128xf32>
    %9 = arith.mulf %8, %8 : vector<32x128xf32>
    %cst_5 = arith.constant dense<0.000000e+00> : vector<128xf32>
    %10 = vector.multi_reduction <add>, %9, %cst_5 [0] : vector<32x128xf32> to vector<128xf32>
    %11 = vector.shape_cast %10 : vector<128xf32> to vector<1x128xf32>
    %cst_6 = arith.constant 3.200000e+01 : f32
    %12 = vector.broadcast %cst_6 : f32 to vector<1x128xf32>
    %13 = arith.divf %11, %12 : vector<1x128xf32>
    %14 = vector.broadcast %6 : vector<1x128xf32> to vector<32x128xf32>
    %15 = arith.subf %0, %14 : vector<32x128xf32>
    %cst_7 = arith.constant 9.99999974E-6 : f32
    %16 = vector.broadcast %cst_7 : f32 to vector<1x128xf32>
    %17 = arith.addf %13, %16 : vector<1x128xf32>
    %18 = math.rsqrt %17 : vector<1x128xf32>
    %19 = vector.broadcast %18 : vector<1x128xf32> to vector<32x128xf32>
    %20 = arith.mulf %15, %19 : vector<32x128xf32>
    %21 = vector.broadcast %1 : vector<32x1xf32> to vector<32x128xf32>
    %22 = arith.mulf %20, %21 : vector<32x128xf32>
    %23 = vector.broadcast %2 : vector<32x1xf32> to vector<32x128xf32>
    %24 = arith.addf %22, %23 : vector<32x128xf32>
    %25 = arith.truncf %24 : vector<32x128xf32> to vector<32x128xbf16>
    %c0_8 = arith.constant 0 : index
    %c0_9 = arith.constant 0 : index
    %26 = vector.load %arg2[%c0_8, %c0_9] : memref<96x32xbf16, #tpu.memory_space<vmem>>, vector<96x32xbf16>
    %cst_10 = arith.constant dense<0.000000e+00> : vector<96x128xf32>
    %27 = tpu.matmul %26, %25, %cst_10 {dimension_numbers = #tpu.dot_dimension_numbers<[1], [0], [0], [1], [0, 0, 1, 1], [], []>} : vector<96x32xbf16>, vector<32x128xbf16>, vector<96x128xf32> -> vector<96x128xf32>
    %c64 = arith.constant 64 : index
    %c0_11 = arith.constant 0 : index
    %28 = vector.load %arg1[%c64, %c0_11] : memref<416x1xf32, #tpu.memory_space<vmem>>, vector<96x1xf32>
    %29 = vector.broadcast %28 : vector<96x1xf32> to vector<96x128xf32>
    %30 = arith.addf %27, %29 : vector<96x128xf32>
    %31 = vector.shape_cast %30 : vector<96x128xf32> to vector<12x8x128xf32>
    %c0_12 = arith.constant 0 : index
    %c0_13 = arith.constant 0 : index
    %c0_14 = arith.constant 0 : index
    %32 = vector.load %arg8[%c0_12, %c0_13, %c0_14] : memref<12x8x128xf32, #tpu.memory_space<vmem>>, vector<12x8x128xf32>
    tpu.vector_store %arg8[%c0_12, %c0_13, %c0_14], %31 {strides = array<i32>} : memref<12x8x128xf32, #tpu.memory_space<vmem>>, vector<12x8x128xf32>,
    %c0_i32 = arith.constant 0 : i32
    %c4_i32 = arith.constant 4 : i32
    %33 = arith.addi %c0_i32, %c4_i32 : i32
    %c1_i32 = arith.constant 1 : i32
    scf.for %arg10 = %c0_i32 to %33 step %c1_i32  : i32 {
      %c1_i32_54 = arith.constant 1 : i32
      %120 = arith.muli %arg10, %c1_i32_54 : i32
      %c0_i32_55 = arith.constant 0 : i32
      %121 = arith.addi %c0_i32_55, %120 : i32
      %122 = arith.index_cast %121 : i32 to index
      %c0_56 = arith.constant 0 : index
      %c0_57 = arith.constant 0 : index
      %123 = vector.load %arg8[%122, %c0_56, %c0_57] : memref<12x8x128xf32, #tpu.memory_space<vmem>>, vector<1x8x128xf32>
      %124 = vector.shape_cast %123 : vector<1x8x128xf32> to vector<8x128xf32>
      %125 = arith.truncf %124 : vector<8x128xf32> to vector<8x128xbf16>
      %c4_i32_58 = arith.constant 4 : i32
      %126 = arith.addi %c4_i32_58, %121 : i32
      %127 = arith.index_cast %126 : i32 to index
      %c0_59 = arith.constant 0 : index
      %c0_60 = arith.constant 0 : index
      %128 = vector.load %arg8[%127, %c0_59, %c0_60] : memref<12x8x128xf32, #tpu.memory_space<vmem>>, vector<1x8x128xf32>
      %129 = vector.shape_cast %128 : vector<1x8x128xf32> to vector<8x128xf32>
      %130 = arith.truncf %129 : vector<8x128xf32> to vector<8x128xbf16>
      %c8_i32 = arith.constant 8 : i32
      %131 = arith.addi %c8_i32, %121 : i32
      %132 = arith.index_cast %131 : i32 to index
      %c0_61 = arith.constant 0 : index
      %c0_62 = arith.constant 0 : index
      %133 = vector.load %arg8[%132, %c0_61, %c0_62] : memref<12x8x128xf32, #tpu.memory_space<vmem>>, vector<1x8x128xf32>
      %134 = vector.shape_cast %133 : vector<1x8x128xf32> to vector<8x128xf32>
      %135 = arith.truncf %134 : vector<8x128xf32> to vector<8x128xbf16>
      %cst_63 = arith.constant dense<0.000000e+00> : vector<128x128xf32>
      %136 = tpu.matmul %125, %130, %cst_63 {dimension_numbers = #tpu.dot_dimension_numbers<[0], [0], [1], [1], [0, 1, 1, 1], [], []>} : vector<8x128xbf16>, vector<8x128xbf16>, vector<128x128xf32> -> vector<128x128xf32>
      %137 = arith.index_cast %121 : i32 to index
      %c0_64 = arith.constant 0 : index
      %c0_65 = arith.constant 0 : index
      %138 = vector.load %arg4[%137, %c0_64, %c0_65] : memref<4x128x128xbf16, #tpu.memory_space<vmem>>, vector<1x128x128xbf16>
      %139 = vector.shape_cast %138 : vector<1x128x128xbf16> to vector<128x128xbf16>
      %140 = arith.extf %139 : vector<128x128xbf16> to vector<128x128xf32>
      %141 = arith.addf %136, %140 : vector<128x128xf32>
      %cst_66 = arith.constant dense<0xFF800000> : vector<128xf32>
      %142 = vector.multi_reduction <maximumf>, %141, %cst_66 [1] : vector<128x128xf32> to vector<128xf32>
      %143 = vector.shape_cast %142 : vector<128xf32> to vector<128x1xf32>
      %144 = vector.broadcast %143 : vector<128x1xf32> to vector<128x128xf32>
      %145 = arith.subf %141, %144 : vector<128x128xf32>
      %146 = math.exp %145 : vector<128x128xf32>
      %cst_67 = arith.constant dense<0.000000e+00> : vector<128xf32>
      %147 = vector.multi_reduction <add>, %146, %cst_67 [1] : vector<128x128xf32> to vector<128xf32>
      %148 = vector.shape_cast %147 : vector<128xf32> to vector<128x1xf32>
      %149 = tpu.reciprocal %148 {approx = true} : vector<128x1xf32> -> vector<128x1xf32>
      %150 = vector.broadcast %149 : vector<128x1xf32> to vector<128x128xf32>
      %151 = arith.mulf %146, %150 : vector<128x128xf32>
      %152 = arith.truncf %151 : vector<128x128xf32> to vector<128x128xbf16>
      %cst_68 = arith.constant dense<0.000000e+00> : vector<8x128xf32>
      %153 = tpu.matmul %135, %152, %cst_68 {dimension_numbers = #tpu.dot_dimension_numbers<[1], [1], [0], [0], [0, 0, 1, 0], [], []>} : vector<8x128xbf16>, vector<128x128xbf16>, vector<8x128xf32> -> vector<8x128xf32>
      %154 = arith.index_cast %121 : i32 to index
      %c0_69 = arith.constant 0 : index
      %c0_70 = arith.constant 0 : index
      %155 = vector.load %arg9[%154, %c0_69, %c0_70] : memref<4x8x128xf32, #tpu.memory_space<vmem>>, vector<1x8x128xf32>
      %156 = vector.shape_cast %155 : vector<1x8x128xf32> to vector<8x128xf32>
      %157 = vector.shape_cast %153 : vector<8x128xf32> to vector<1x8x128xf32>
      tpu.vector_store %arg9[%154, %c0_69, %c0_70], %157 {strides = array<i32>} : memref<4x8x128xf32, #tpu.memory_space<vmem>>, vector<1x8x128xf32>,
    }
    %c4_i32_15 = arith.constant 4 : i32
    %c0_16 = arith.constant 0 : index
    %c0_17 = arith.constant 0 : index
    %c0_18 = arith.constant 0 : index
    %34 = vector.load %arg9[%c0_16, %c0_17, %c0_18] : memref<4x8x128xf32, #tpu.memory_space<vmem>>, vector<4x8x128xf32>
    %35 = vector.shape_cast %34 : vector<4x8x128xf32> to vector<32x128xf32>
    %36 = arith.truncf %35 : vector<32x128xf32> to vector<32x128xbf16>
    %c0_19 = arith.constant 0 : index
    %c0_20 = arith.constant 0 : index
    %37 = vector.load %arg3[%c0_19, %c0_20] : memref<32x32xbf16, #tpu.memory_space<vmem>>, vector<32x32xbf16>
    %cst_21 = arith.constant dense<0.000000e+00> : vector<32x128xf32>
    %38 = tpu.matmul %37, %36, %cst_21 {dimension_numbers = #tpu.dot_dimension_numbers<[1], [0], [0], [1], [0, 0, 1, 1], [], []>} : vector<32x32xbf16>, vector<32x128xbf16>, vector<32x128xf32> -> vector<32x128xf32>
    %c160 = arith.constant 160 : index
    %c0_22 = arith.constant 0 : index
    %39 = vector.load %arg1[%c160, %c0_22] : memref<416x1xf32, #tpu.memory_space<vmem>>, vector<32x1xf32>
    %40 = vector.broadcast %39 : vector<32x1xf32> to vector<32x128xf32>
    %41 = arith.addf %38, %40 : vector<32x128xf32>
    %42 = arith.addf %0, %41 : vector<32x128xf32>
    %c192 = arith.constant 192 : index
    %c0_23 = arith.constant 0 : index
    %43 = vector.load %arg1[%c192, %c0_23] : memref<416x1xf32, #tpu.memory_space<vmem>>, vector<32x1xf32>
    %c224 = arith.constant 224 : index
    %c0_24 = arith.constant 0 : index
    %44 = vector.load %arg1[%c224, %c0_24] : memref<416x1xf32, #tpu.memory_space<vmem>>, vector<32x1xf32>
    %cst_25 = arith.constant dense<0.000000e+00> : vector<128xf32>
    %45 = vector.multi_reduction <add>, %42, %cst_25 [0] : vector<32x128xf32> to vector<128xf32>
    %46 = vector.shape_cast %45 : vector<128xf32> to vector<1x128xf32>
    %cst_26 = arith.constant 3.200000e+01 : f32
    %47 = vector.broadcast %cst_26 : f32 to vector<1x128xf32>
    %48 = arith.divf %46, %47 : vector<1x128xf32>
    %49 = vector.broadcast %48 : vector<1x128xf32> to vector<32x128xf32>
    %50 = arith.subf %42, %49 : vector<32x128xf32>
    %51 = arith.mulf %50, %50 : vector<32x128xf32>
    %cst_27 = arith.constant dense<0.000000e+00> : vector<128xf32>
    %52 = vector.multi_reduction <add>, %51, %cst_27 [0] : vector<32x128xf32> to vector<128xf32>
    %53 = vector.shape_cast %52 : vector<128xf32> to vector<1x128xf32>
    %cst_28 = arith.constant 3.200000e+01 : f32
    %54 = vector.broadcast %cst_28 : f32 to vector<1x128xf32>
    %55 = arith.divf %53, %54 : vector<1x128xf32>
    %56 = vector.broadcast %48 : vector<1x128xf32> to vector<32x128xf32>
    %57 = arith.subf %42, %56 : vector<32x128xf32>
    %cst_29 = arith.constant 9.99999974E-6 : f32
    %58 = vector.broadcast %cst_29 : f32 to vector<1x128xf32>
    %59 = arith.addf %55, %58 : vector<1x128xf32>
    %60 = math.rsqrt %59 : vector<1x128xf32>
    %61 = vector.broadcast %60 : vector<1x128xf32> to vector<32x128xf32>
    %62 = arith.mulf %57, %61 : vector<32x128xf32>
    %63 = vector.broadcast %43 : vector<32x1xf32> to vector<32x128xf32>
    %64 = arith.mulf %62, %63 : vector<32x128xf32>
    %65 = vector.broadcast %44 : vector<32x1xf32> to vector<32x128xf32>
    %66 = arith.addf %64, %65 : vector<32x128xf32>
    %67 = arith.truncf %66 : vector<32x128xf32> to vector<32x128xbf16>
    %c0_30 = arith.constant 0 : index
    %c0_31 = arith.constant 0 : index
    %68 = vector.load %arg5[%c0_30, %c0_31] : memref<128x32xbf16, #tpu.memory_space<vmem>>, vector<128x32xbf16>
    %cst_32 = arith.constant dense<0.000000e+00> : vector<128x128xf32>
    %69 = tpu.matmul %68, %67, %cst_32 {dimension_numbers = #tpu.dot_dimension_numbers<[1], [0], [0], [1], [0, 0, 1, 1], [], []>} : vector<128x32xbf16>, vector<32x128xbf16>, vector<128x128xf32> -> vector<128x128xf32>
    %c256 = arith.constant 256 : index
    %c0_33 = arith.constant 0 : index
    %70 = vector.load %arg1[%c256, %c0_33] : memref<416x1xf32, #tpu.memory_space<vmem>>, vector<128x1xf32>
    %71 = vector.broadcast %70 : vector<128x1xf32> to vector<128x128xf32>
    %72 = arith.addf %69, %71 : vector<128x128xf32>
    %73 = math.absf %72 : vector<128x128xf32>
    %cst_34 = arith.constant 0.707106769 : f32
    %74 = vector.broadcast %cst_34 : f32 to vector<128x128xf32>
    %75 = arith.mulf %73, %74 : vector<128x128xf32>
    %cst_35 = arith.constant 0.327591091 : f32
    %76 = vector.broadcast %cst_35 : f32 to vector<128x128xf32>
    %77 = arith.mulf %76, %75 : vector<128x128xf32>
    %cst_36 = arith.constant 1.000000e+00 : f32
    %78 = vector.broadcast %cst_36 : f32 to vector<128x128xf32>
    %79 = arith.addf %78, %77 : vector<128x128xf32>
    %80 = tpu.reciprocal %79 {approx = true} : vector<128x128xf32> -> vector<128x128xf32>
    %cst_37 = arith.constant 1.06140542 : f32
    %81 = vector.broadcast %cst_37 : f32 to vector<128x128xf32>
    %82 = arith.mulf %81, %80 : vector<128x128xf32>
    %cst_38 = arith.constant -1.45315206 : f32
    %83 = vector.broadcast %cst_38 : f32 to vector<128x128xf32>
    %84 = arith.addf %82, %83 : vector<128x128xf32>
    %85 = arith.mulf %84, %80 : vector<128x128xf32>
    %cst_39 = arith.constant 1.42141378 : f32
    %86 = vector.broadcast %cst_39 : f32 to vector<128x128xf32>
    %87 = arith.addf %85, %86 : vector<128x128xf32>
    %88 = arith.mulf %87, %80 : vector<128x128xf32>
    %cst_40 = arith.constant -0.284496725 : f32
    %89 = vector.broadcast %cst_40 : f32 to vector<128x128xf32>
    %90 = arith.addf %88, %89 : vector<128x128xf32>
    %91 = arith.mulf %90, %80 : vector<128x128xf32>
    %cst_41 = arith.constant 0.254829586 : f32
    %92 = vector.broadcast %cst_41 : f32 to vector<128x128xf32>
    %93 = arith.addf %91, %92 : vector<128x128xf32>
    %94 = arith.mulf %93, %80 : vector<128x128xf32>
    %cst_42 = arith.constant 0.000000e+00 : f32
    %95 = vector.broadcast %cst_42 : f32 to vector<128x128xf32>
    %96 = arith.subf %95, %75 : vector<128x128xf32>
    %97 = arith.mulf %96, %75 : vector<128x128xf32>
    %98 = math.exp %97 : vector<128x128xf32>
    %99 = arith.mulf %94, %98 : vector<128x128xf32>
    %cst_43 = arith.constant 1.000000e+00 : f32
    %100 = vector.broadcast %cst_43 : f32 to vector<128x128xf32>
    %101 = arith.subf %100, %99 : vector<128x128xf32>
    %cst_44 = arith.constant 0.000000e+00 : f32
    %102 = vector.broadcast %cst_44 : f32 to vector<128x128xf32>
    %103 = arith.cmpf oge, %72, %102 : vector<128x128xf32>
    %cst_45 = arith.constant 0.000000e+00 : f32
    %104 = vector.broadcast %cst_45 : f32 to vector<128x128xf32>
    %105 = arith.subf %104, %101 : vector<128x128xf32>
    %106 = arith.select %103, %101, %105 : vector<128x128xi1>, vector<128x128xf32>
    %cst_46 = arith.constant 1.000000e+00 : f32
    %107 = vector.broadcast %cst_46 : f32 to vector<128x128xf32>
    %108 = arith.addf %107, %106 : vector<128x128xf32>
    %cst_47 = arith.constant 5.000000e-01 : f32
    %109 = vector.broadcast %cst_47 : f32 to vector<128x128xf32>
    %110 = arith.mulf %109, %108 : vector<128x128xf32>
    %111 = arith.mulf %72, %110 : vector<128x128xf32>
    %112 = arith.truncf %111 : vector<128x128xf32> to vector<128x128xbf16>
    %c0_48 = arith.constant 0 : index
    %c0_49 = arith.constant 0 : index
    %113 = vector.load %arg6[%c0_48, %c0_49] : memref<32x128xbf16, #tpu.memory_space<vmem>>, vector<32x128xbf16>
    %cst_50 = arith.constant dense<0.000000e+00> : vector<32x128xf32>
    %114 = tpu.matmul %113, %112, %cst_50 {dimension_numbers = #tpu.dot_dimension_numbers<[1], [0], [0], [1], [0, 0, 1, 1], [], []>} : vector<32x128xbf16>, vector<128x128xbf16>, vector<32x128xf32> -> vector<32x128xf32>
    %c384 = arith.constant 384 : index
    %c0_51 = arith.constant 0 : index
    %115 = vector.load %arg1[%c384, %c0_51] : memref<416x1xf32, #tpu.memory_space<vmem>>, vector<32x1xf32>
    %116 = vector.broadcast %115 : vector<32x1xf32> to vector<32x128xf32>
    %117 = arith.addf %114, %116 : vector<32x128xf32>
    %118 = arith.addf %42, %117 : vector<32x128xf32>
    %c0_52 = arith.constant 0 : index
    %c0_53 = arith.constant 0 : index
    %119 = vector.load %arg7[%c0_52, %c0_53] : memref<32x128xf32, #tpu.memory_space<vmem>>, vector<32x128xf32>
    tpu.vector_store %arg7[%c0_52, %c0_53], %118 {strides = array<i32>} : memref<32x128xf32, #tpu.memory_space<vmem>>, vector<32x128xf32>,
    return
  }
}

</mosaic_0001>

<llo_original>
// kernel: swin_block_forward.1
$region0: #{swin_block_forward.1}
  #allocation0 [shape = 'u32[]', space=smem, size = 0x4, offset = 0x4, fixed_abs, tag = 'smem constant byte address 0x4 - core index']
  #allocation1 [shape = 'u32[144,128]{1,0:T(1,128)}', space=vmem, size = 0x12000, scoped, tag = 'internal scratch']
  #allocation2 [shape = 'f32[12,8,128]{2,1,0:T(8,128)}', space=vmem, size = 0xc000, scoped, tag = 'scratch operand']
  #allocation3 [shape = 'f32[4,8,128]{2,1,0:T(8,128)}', space=vmem, size = 0x4000, scoped, tag = 'scratch operand']
  %s0 = inlined_call_operand.vmem [shape: f32[32,128], index: 0, kind: input, shape index: {}]
  %s1 = inlined_call_operand.vmem [shape: f32[416,1], index: 1, kind: input, shape index: {}]
  %s2 = inlined_call_operand.vmem [shape: bf16[96,32], index: 2, kind: input, shape index: {}]
  %s3 = inlined_call_operand.vmem [shape: bf16[32,32], index: 3, kind: input, shape index: {}]
  %s4 = inlined_call_operand.vmem [shape: bf16[4,128,128], index: 4, kind: input, shape index: {}]
  %s5 = inlined_call_operand.vmem [shape: bf16[128,32], index: 5, kind: input, shape index: {}]
  %s6 = inlined_call_operand.vmem [shape: bf16[32,128], index: 6, kind: input, shape index: {}]
  %s7 = inlined_call_operand.vmem [shape: f32[32,128], index: 7, kind: output, shape index: {}]
  %s8 = sld [smem:[#allocation0]]
  $region45: #{swin_block_forward.1} parent=0
    _
  %s10 = ssub.s32 1, %s8
  %s11 = scalar_select 0, %s10, %s8
  // Predicated region
  $region2: #{swin_block_forward.1} parent=0 // pred_check
    _
  $region3: #{swin_block_forward.1} parent=0 // pred_check_branch
    %13 = sbr.rel (0) target = $region5
  $region4: #{swin_block_forward.1} parent=0 // pred_region
    _
  $region5: #{swin_block_forward.1} parent=0 // pred_fallthru
    _
  // Predicated region
  $region6: #{swin_block_forward.1} parent=0 // pred_check
    _
  $region7: #{swin_block_forward.1} parent=0 // pred_check_branch
    %15 = sbr.rel (0) target = $region9
  $region8: #{swin_block_forward.1} parent=0 // pred_region
    _
  $region9: #{swin_block_forward.1} parent=0 // pred_fallthru
    _
  // Predicated region
  $region10: #{swin_block_forward.1} parent=0 // pred_check
    _
  $region11: #{swin_block_forward.1} parent=0 // pred_check_branch
    %17 = sbr.rel (0) target = $region13
  $region12: #{swin_block_forward.1} parent=0 // pred_region
    _
  $region13: #{swin_block_forward.1} parent=0 // pred_fallthru
    _
  // Predicated region
  $region14: #{swin_block_forward.1} parent=0 // pred_check
    _
  $region15: #{swin_block_forward.1} parent=0 // pred_check_branch
    %19 = sbr.rel (0) target = $region17
  $region16: #{swin_block_forward.1} parent=0 // pred_region
    _
  $region17: #{swin_block_forward.1} parent=0 // pred_fallthru
    _
  // Predicated region
  $region18: #{swin_block_forward.1} parent=0 // pred_check
    _
  $region19: #{swin_block_forward.1} parent=0 // pred_check_branch
    %21 = sbr.rel (0) target = $region21
  $region20: #{swin_block_forward.1} parent=0 // pred_region
    _
  $region21: #{swin_block_forward.1} parent=0 // pred_fallthru
    _
  // Predicated region
  $region22: #{swin_block_forward.1} parent=0 // pred_check
    _
  $region23: #{swin_block_forward.1} parent=0 // pred_check_branch
    %23 = sbr.rel (0) target = $region25
  $region24: #{swin_block_forward.1} parent=0 // pred_region
    _
  $region25: #{swin_block_forward.1} parent=0 // pred_fallthru
    _
  // Predicated region
  $region26: #{swin_block_forward.1} parent=0 // pred_check
    _
  $region27: #{swin_block_forward.1} parent=0 // pred_check_branch
    %25 = sbr.rel (0) target = $region29
  $region28: #{swin_block_forward.1} parent=0 // pred_region
    _
  $region29: #{swin_block_forward.1} parent=0 // pred_fallthru
    _
  %v27 = vld [vmem:[%s0] sm:$0xff]
  %v28 = vld [vmem:[%s0 + $0x8] sm:$0xff]
  %v29 = vld [vmem:[%s0 + $0x10] sm:$0xff]
  %v30 = vld [vmem:[%s0 + $0x18] sm:$0xff]
  %v31 = vld [vmem:[%s1] sm:$0xff]
  %v32 = vld [vmem:[%s1 + $0x8] sm:$0xff]
  %v33 = vld [vmem:[%s1 + $0x10] sm:$0xff]
  %v34 = vld [vmem:[%s1 + $0x18] sm:$0xff]
  %v35 = vld [vmem:[%s1 + $0x20] sm:$0xff]
  %v36 = vld [vmem:[%s1 + $0x28] sm:$0xff]
  %v37 = vld [vmem:[%s1 + $0x30] sm:$0xff]
  %v38 = vld [vmem:[%s1 + $0x38] sm:$0xff]
  %v39 = vadd.f32 %v27, %v28
  %v40 = vadd.f32 %v39, %v29
  %v41 = vadd.f32 %v40, %v30
  %v42 = vrot.slane %v41, 4
  %v43 = vadd.f32 %v41, %v42
  %v44 = vrot.slane %v43, 2
  %v45 = vadd.f32 %v43, %v44
  %v46 = vrot.slane %v45, 1
  %v47 = vadd.f32 %v45, %v46
  %v48 = vrcp.pop 32.0
  %v49 = vmul.f32 %v47, %v48
  %v50 = vsub.f32 %v27, %v49
  %v51 = vsub.f32 %v28, %v49
  %v52 = vsub.f32 %v29, %v49
  %v53 = vsub.f32 %v30, %v49
  %v54 = vmul.f32 %v50, %v50
  %v55 = vmul.f32 %v51, %v51
  %v56 = vmul.f32 %v52, %v52
  %v57 = vmul.f32 %v53, %v53
  %v58 = vadd.f32 %v54, %v55
  %v59 = vadd.f32 %v58, %v56
  %v60 = vadd.f32 %v59, %v57
  %v61 = vrot.slane %v60, 4
  %v62 = vadd.f32 %v60, %v61
  %v63 = vrot.slane %v62, 2
  %v64 = vadd.f32 %v62, %v63
  %v65 = vrot.slane %v64, 1
  %v66 = vadd.f32 %v64, %v65
  %v67 = vmul.f32 %v66, %v48
  %v68 = vadd.f32 %v67, 1e-05
  %v69 = vrsqrt.pop %v68
  %v70 = vmul.f32 %v50, %v69
  %v71 = vmul.f32 %v51, %v69
  %v72 = vmul.f32 %v52, %v69
  %v73 = vmul.f32 %v53, %v69
  %75 = vset.pattern.permute.xlu0 0
  %76 = vperm.xlu0 %75, %v31
  %v77 = vpop.permute.xlu0 %76
  %80 = vset.pattern.permute.xlu0 0
  %81 = vperm.xlu0 %80, %v32
  %v82 = vpop.permute.xlu0 %81
  %85 = vset.pattern.permute.xlu0 0
  %86 = vperm.xlu0 %85, %v33
  %v87 = vpop.permute.xlu0 %86
  %90 = vset.pattern.permute.xlu0 0
  %91 = vperm.xlu0 %90, %v34
  %v92 = vpop.permute.xlu0 %91
  %v94 = vmul.f32 %v70, %v77
  %v95 = vmul.f32 %v71, %v82
  %v96 = vmul.f32 %v72, %v87
  %v97 = vmul.f32 %v73, %v92
  %99 = vset.pattern.permute.xlu0 0
  %100 = vperm.xlu0 %99, %v35
  %v101 = vpop.permute.xlu0 %100
  %104 = vset.pattern.permute.xlu0 0
  %105 = vperm.xlu0 %104, %v36
  %v106 = vpop.permute.xlu0 %105
  %109 = vset.pattern.permute.xlu0 0
  %110 = vperm.xlu0 %109, %v37
  %v111 = vpop.permute.xlu0 %110
  %114 = vset.pattern.permute.xlu0 0
  %115 = vperm.xlu0 %114, %v38
  %v116 = vpop.permute.xlu0 %115
  %v118 = vadd.f32 %v94, %v101
  %v119 = vadd.f32 %v95, %v106
  %v120 = vadd.f32 %v96, %v111
  %v121 = vadd.f32 %v97, %v116
  %v122 = vpack.c.bf16 %v119, %v118
  %v123 = vpack.c.bf16 %v121, %v120
  %v124 = vld [vmem:[%s2] sm:$0xf]
  %v125 = vld [vmem:[%s2 + $0x4] sm:$0xf]
  %v126 = vld [vmem:[%s2 + $0x8] sm:$0xf]
  %v127 = vld [vmem:[%s2 + $0xc] sm:$0xf]
  %v128 = vld [vmem:[%s2 + $0x10] sm:$0xf]
  %v129 = vld [vmem:[%s2 + $0x14] sm:$0xf]
  %v130 = vld [vmem:[%s2 + $0x18] sm:$0xf]
  %v131 = vld [vmem:[%s2 + $0x1c] sm:$0xf]
  %v132 = vld [vmem:[%s2 + $0x20] sm:$0xf]
  %v133 = vld [vmem:[%s2 + $0x24] sm:$0xf]
  %v134 = vld [vmem:[%s2 + $0x28] sm:$0xf]
  %v135 = vld [vmem:[%s2 + $0x2c] sm:$0xf]
  %v136 = vld [vmem:[%s1 + $0x40] sm:$0xff]
  %v137 = vld [vmem:[%s1 + $0x48] sm:$0xff]
  %v138 = vld [vmem:[%s1 + $0x50] sm:$0xff]
  %v139 = vld [vmem:[%s1 + $0x58] sm:$0xff]
  %v140 = vld [vmem:[%s1 + $0x60] sm:$0xff]
  %v141 = vld [vmem:[%s1 + $0x68] sm:$0xff]
  %v142 = vld [vmem:[%s1 + $0x70] sm:$0xff]
  %v143 = vld [vmem:[%s1 + $0x78] sm:$0xff]
  %v144 = vld [vmem:[%s1 + $0x80] sm:$0xff]
  %v145 = vld [vmem:[%s1 + $0x88] sm:$0xff]
  %v146 = vld [vmem:[%s1 + $0x90] sm:$0xff]
  %v147 = vld [vmem:[%s1 + $0x98] sm:$0xff]
  %149 = vset.pattern.permute.xlu0 0
  %150 = vperm.xlu0 %149, %v136
  %v151 = vpop.permute.xlu0 %150
  %154 = vset.pattern.permute.xlu0 0
  %155 = vperm.xlu0 %154, %v137
  %v156 = vpop.permute.xlu0 %155
  %159 = vset.pattern.permute.xlu0 0
  %160 = vperm.xlu0 %159, %v138
  %v161 = vpop.permute.xlu0 %160
  %164 = vset.pattern.permute.xlu0 0
  %165 = vperm.xlu0 %164, %v139
  %v166 = vpop.permute.xlu0 %165
  %169 = vset.pattern.permute.xlu0 0
  %170 = vperm.xlu0 %169, %v140
  %v171 = vpop.permute.xlu0 %170
  %174 = vset.pattern.permute.xlu0 0
  %175 = vperm.xlu0 %174, %v141
  %v176 = vpop.permute.xlu0 %175
  %179 = vset.pattern.permute.xlu0 0
  %180 = vperm.xlu0 %179, %v142
  %v181 = vpop.permute.xlu0 %180
  %184 = vset.pattern.permute.xlu0 0
  %185 = vperm.xlu0 %184, %v143
  %v186 = vpop.permute.xlu0 %185
  %189 = vset.pattern.permute.xlu0 0
  %190 = vperm.xlu0 %189, %v144
  %v191 = vpop.permute.xlu0 %190
  %194 = vset.pattern.permute.xlu0 0
  %195 = vperm.xlu0 %194, %v145
  %v196 = vpop.permute.xlu0 %195
  %199 = vset.pattern.permute.xlu0 0
  %200 = vperm.xlu0 %199, %v146
  %v201 = vpop.permute.xlu0 %200
  %204 = vset.pattern.permute.xlu0 0
  %205 = vperm.xlu0 %204, %v147
  %v206 = vpop.permute.xlu0 %205
  %v220 = vunpack.c.l.b16 %v124
  %v221 = vunpack.c.l.b16 %v125
  %v222 = vunpack.c.l.b16 %v126
  %v223 = vunpack.c.l.b16 %v127
  %v224 = vunpack.c.l.b16 %v128
  %v225 = vunpack.c.l.b16 %v129
  %v226 = vunpack.c.l.b16 %v130
  %v227 = vunpack.c.l.b16 %v131
  %v228 = vunpack.c.l.b16 %v132
  %v229 = vunpack.c.l.b16 %v133
  %v230 = vunpack.c.l.b16 %v134
  %v231 = vunpack.c.l.b16 %v135
  %v232 = vpack.c.b16 %v221, %v220
  %v233 = vpack.c.b16 %v223, %v222
  %v234 = vpack.c.b16 %v225, %v224
  %v235 = vpack.c.b16 %v227, %v226
  %v236 = vpack.c.b16 %v229, %v228
  %v237 = vpack.c.b16 %v231, %v230
  %vm238 = vcmask 261120
  %v240 = vsel %vm238, %v232, 0
  %v243 = vsel %vm238, %v233, 0
  %v246 = vsel %vm238, %v234, 0
  %v249 = vsel %vm238, %v235, 0
  %v252 = vsel %vm238, %v236, 0
  %v255 = vsel %vm238, %v237, 0
  %257 = vmatprep.subr.bf16.mxu0 0
  %258 = vmatpush1.bf16.msra.mxu0 %v122
  %259 = vmatprep.subr.bf16.mxu0 0
  %260 = vmatpush1.bf16.msra.mxu0 %v123
  %261 = vmatprep.subr.bf16.mxu0 0
  %262 = vmatpush1.bf16.msra.mxu0 0
  %263 = vmatprep.subr.bf16.mxu0 0
  %264 = vmatpush1.bf16.msra.mxu0 0
  %265 = vmatprep.subr.bf16.mxu0 0
  %266 = vmatpush1.bf16.msra.mxu0 0
  %267 = vmatprep.subr.bf16.mxu0 0
  %268 = vmatpush1.bf16.msra.mxu0 0
  %269 = vmatprep.subr.bf16.mxu0 0
  %270 = vmatpush1.bf16.msra.mxu0 0
  %271 = vmatprep.subr.bf16.mxu0 0
  %272 = vmatpush1.bf16.msra.mxu0 0
  %273 = vmatprep.subr.bf16.mxu0 0
  %274 = vmatpush1.bf16.msra.mxu0 0
  %275 = vmatprep.subr.bf16.mxu0 0
  %276 = vmatpush1.bf16.msra.mxu0 0
  %277 = vmatprep.subr.bf16.mxu0 0
  %278 = vmatpush1.bf16.msra.mxu0 0
  %279 = vmatprep.subr.bf16.mxu0 0
  %280 = vmatpush1.bf16.msra.mxu0 0
  %281 = vmatprep.subr.bf16.mxu0 0
  %282 = vmatpush1.bf16.msra.mxu0 0
  %283 = vmatprep.subr.bf16.mxu0 0
  %284 = vmatpush1.bf16.msra.mxu0 0
  %285 = vmatprep.subr.bf16.mxu0 0
  %286 = vmatpush1.bf16.msra.mxu0 0
  %287 = vmatprep.subr.bf16.mxu0 0
  %288 = vmatpush1.bf16.msra.mxu0 0
  %289 = vmatprep.mubr.bf16.mxu0 0
  %290 = vmatmul.mubr.bf16.gmra.mrb[0].mxu0 %v240
  %v291 = vpop.f32.mrb[0].mxu0
  %v292 = vadd.f32 %v151, %v291
  %v293 = vpop.f32.mrb[0].mxu0
  %v294 = vpop.f32.mrb[0].mxu0
  %v295 = vadd.f32 %v156, %v294
  %v296 = vpop.f32.mrb[0].mxu0
  %297 = vmatprep.mubr.bf16.mxu0 0
  %298 = vmatmul.mubr.bf16.gmra.mrb[0].mxu0 %v243
  %v299 = vpop.f32.mrb[0].mxu0
  %v300 = vadd.f32 %v161, %v299
  %v301 = vpop.f32.mrb[0].mxu0
  %v302 = vpop.f32.mrb[0].mxu0
  %v303 = vadd.f32 %v166, %v302
  %v304 = vpop.f32.mrb[0].mxu0
  %305 = vmatprep.mubr.bf16.mxu0 0
  %306 = vmatmul.mubr.bf16.gmra.mrb[0].mxu0 %v246
  %v307 = vpop.f32.mrb[0].mxu0
  %v308 = vadd.f32 %v171, %v307
  %v309 = vpop.f32.mrb[0].mxu0
  %v310 = vpop.f32.mrb[0].mxu0
  %v311 = vadd.f32 %v176, %v310
  %v312 = vpop.f32.mrb[0].mxu0
  %313 = vmatprep.mubr.bf16.mxu0 0
  %314 = vmatmul.mubr.bf16.gmra.mrb[0].mxu0 %v249
  %v315 = vpop.f32.mrb[0].mxu0
  %v316 = vadd.f32 %v181, %v315
  %v317 = vpop.f32.mrb[0].mxu0
  %v318 = vpop.f32.mrb[0].mxu0
  %v319 = vadd.f32 %v186, %v318
  %v320 = vpop.f32.mrb[0].mxu0
  %321 = vmatprep.mubr.bf16.mxu0 0
  %322 = vmatmul.mubr.bf16.gmra.mrb[0].mxu0 %v252
  %v323 = vpop.f32.mrb[0].mxu0
  %v324 = vadd.f32 %v191, %v323
  %v325 = vpop.f32.mrb[0].mxu0
  %v326 = vpop.f32.mrb[0].mxu0
  %v327 = vadd.f32 %v196, %v326
  %v328 = vpop.f32.mrb[0].mxu0
  %329 = vmatprep.mubr.bf16.mxu0 0
  %330 = vmatmul.mubr.bf16.gmra.mrb[0].mxu0 %v255
  %v331 = vpop.f32.mrb[0].mxu0
  %v332 = vadd.f32 %v201, %v331
  %v333 = vpop.f32.mrb[0].mxu0
  %v334 = vpop.f32.mrb[0].mxu0
  %v335 = vadd.f32 %v206, %v334
  %v336 = vpop.f32.mrb[0].mxu0
  %337 = vdwg.mxu0
  %338 = vst [vmem:[#allocation2] sm:$0xff] %v292
  %339 = vst [vmem:[#allocation2 + $0x8] sm:$0xff] %v295
  %340 = vst [vmem:[#allocation2 + $0x10] sm:$0xff] %v300
  %341 = vst [vmem:[#allocation2 + $0x18] sm:$0xff] %v303
  %342 = vst [vmem:[#allocation2 + $0x20] sm:$0xff] %v308
  %343 = vst [vmem:[#allocation2 + $0x28] sm:$0xff] %v311
  %344 = vst [vmem:[#allocation2 + $0x30] sm:$0xff] %v316
  %345 = vst [vmem:[#allocation2 + $0x38] sm:$0xff] %v319
  %346 = vst [vmem:[#allocation2 + $0x40] sm:$0xff] %v324
  %347 = vst [vmem:[#allocation2 + $0x48] sm:$0xff] %v327
  %348 = vst [vmem:[#allocation2 + $0x50] sm:$0xff] %v332
  %349 = vst [vmem:[#allocation2 + $0x58] sm:$0xff] %v335
  loop: start=0, step=1, limit=4
  $region30: #{swin_block_forward.1} parent=0 // loop_pre_header
    _
  $region31: #{swin_block_forward.1} parent=0 // loop_header
    %s351 = sphi 0, %s355
    %p352 = scmp.ge.s32.totalorder %s351, 4
  $region32: #{swin_block_forward.1} parent=0 // loop_header_branch
    %354 = sbr.rel (%p352) target = $region36
  $region33: #{swin_block_forward.1} parent=0 // loop_body
    %s356 = smul.u32 %s351, 8
    %s357 = scalar_lea.vmem [#allocation2], %s356
    %v358 = vld [vmem:[%s357] sm:$0xff]
    %v359 = vpack.c.bf16 %v358, %v358
    %s360 = sadd.s32 %s351, 4
    %s361 = smul.u32 %s360, 8
    %s362 = scalar_lea.vmem [#allocation2], %s361
    %v363 = vld [vmem:[%s362] sm:$0xff]
    %v364 = vpack.c.bf16 %v363, %v363
    %s365 = sadd.s32 %s351, 8
    %s366 = smul.u32 %s365, 8
    %s367 = scalar_lea.vmem [#allocation2], %s366
    %v368 = vld [vmem:[%s367] sm:$0xff]
    %v369 = vpack.c.bf16 %v368, %v368
    %s370 = smul.u32 %s351, 16
    %s371 = smul.addr %s370, 4
    %s372 = scalar_lea.vmem %s4, %s371
    %v373 = vld [vmem:[%s372] sm:$0xf]
    %v374 = vld [vmem:[%s372 + $0x4] sm:$0xf]
    %v375 = vld [vmem:[%s372 + $0x8] sm:$0xf]
    %v376 = vld [vmem:[%s372 + $0xc] sm:$0xf]
    %v377 = vld [vmem:[%s372 + $0x10] sm:$0xf]
    %v378 = vld [vmem:[%s372 + $0x14] sm:$0xf]
    %v379 = vld [vmem:[%s372 + $0x18] sm:$0xf]
    %v380 = vld [vmem:[%s372 + $0x1c] sm:$0xf]
    %v381 = vld [vmem:[%s372 + $0x20] sm:$0xf]
    %v382 = vld [vmem:[%s372 + $0x24] sm:$0xf]
    %v383 = vld [vmem:[%s372 + $0x28] sm:$0xf]
    %v384 = vld [vmem:[%s372 + $0x2c] sm:$0xf]
    %v385 = vld [vmem:[%s372 + $0x30] sm:$0xf]
    %v386 = vld [vmem:[%s372 + $0x34] sm:$0xf]
    %v387 = vld [vmem:[%s372 + $0x38] sm:$0xf]
    %v388 = vld [vmem:[%s372 + $0x3c] sm:$0xf]
    %v389 = vunpack.c.l.bf16 %v373
    %v390 = vunpack.c.l.bf16 %v374
    %v391 = vunpack.c.l.bf16 %v375
    %v392 = vunpack.c.l.bf16 %v376
    %v393 = vunpack.c.l.bf16 %v377
    %v394 = vunpack.c.l.bf16 %v378
    %v395 = vunpack.c.l.bf16 %v379
    %v396 = vunpack.c.l.bf16 %v380
    %v397 = vunpack.c.l.bf16 %v381
    %v398 = vunpack.c.l.bf16 %v382
    %v399 = vunpack.c.l.bf16 %v383
    %v400 = vunpack.c.l.bf16 %v384
    %v401 = vunpack.c.l.bf16 %v385
    %v402 = vunpack.c.l.bf16 %v386
    %v403 = vunpack.c.l.bf16 %v387
    %v404 = vunpack.c.l.bf16 %v388
    %405 = vxpose.xlu0.c.b16.start [1/8] %v359, 128
    %406 = vxpose.xlu0.c.b16.cont [2/8] 0, 128
    %407 = vxpose.xlu0.c.b16.cont [3/8] 0, 128
    %408 = vxpose.xlu0.c.b16.cont [4/8] 0, 128
    %409 = vxpose.xlu0.c.b16.cont [5/8] 0, 128
    %410 = vxpose.xlu0.c.b16.cont [6/8] 0, 128
    %411 = vxpose.xlu0.c.b16.cont [7/8] 0, 128
    %412 = vxpose.xlu0.c.b16.end [8/8] 0, 128
    %v413 = vpop.trf.xlu0
    %v414 = vpop.trf.xlu0
    %v415 = vpop.trf.xlu0
    %v416 = vpop.trf.xlu0
    %v417 = vpop.trf.xlu0
    %v418 = vpop.trf.xlu0
    %v419 = vpop.trf.xlu0
    %v420 = vpop.trf.xlu0
    %vm421 = vcmask 64512
    %v423 = vsel %vm421, %v413, 0
    %v426 = vsel %vm421, %v414, 0
    %v429 = vsel %vm421, %v415, 0
    %v432 = vsel %vm421, %v416, 0
    %v435 = vsel %vm421, %v417, 0
    %v438 = vsel %vm421, %v418, 0
    %v441 = vsel %vm421, %v419, 0
    %v444 = vsel %vm421, %v420, 0
    %vm446 = vcmask 1043456
    %v448 = vsel %vm446, %v364, 0
    %450 = vmatprep.subr.bf16.mxu0 0
    %451 = vmatpush1.bf16.msra.mxu0 %v448
    %452 = vmatprep.subr.bf16.mxu0 0
    %453 = vmatpush1.bf16.msra.mxu0 0
    %454 = vmatprep.subr.bf16.mxu0 0
    %455 = vmatpush1.bf16.msra.mxu0 0
    %456 = vmatprep.subr.bf16.mxu0 0
    %457 = vmatpush1.bf16.msra.mxu0 0
    %458 = vmatprep.subr.bf16.mxu0 0
    %459 = vmatpush1.bf16.msra.mxu0 0
    %460 = vmatprep.subr.bf16.mxu0 0
    %461 = vmatpush1.bf16.msra.mxu0 0
    %462 = vmatprep.subr.bf16.mxu0 0
    %463 = vmatpush1.bf16.msra.mxu0 0
    %464 = vmatprep.subr.bf16.mxu0 0
    %465 = vmatpush1.bf16.msra.mxu0 0
    %466 = vmatprep.subr.bf16.mxu0 0
    %467 = vmatpush1.bf16.msra.mxu0 0
    %468 = vmatprep.subr.bf16.mxu0 0
    %469 = vmatpush1.bf16.msra.mxu0 0
    %470 = vmatprep.subr.bf16.mxu0 0
    %471 = vmatpush1.bf16.msra.mxu0 0
    %472 = vmatprep.subr.bf16.mxu0 0
    %473 = vmatpush1.bf16.msra.mxu0 0
    %474 = vmatprep.subr.bf16.mxu0 0
    %475 = vmatpush1.bf16.msra.mxu0 0
    %476 = vmatprep.subr.bf16.mxu0 0
    %477 = vmatpush1.bf16.msra.mxu0 0
    %478 = vmatprep.subr.bf16.mxu0 0
    %479 = vmatpush1.bf16.msra.mxu0 0
    %480 = vmatprep.subr.bf16.mxu0 0
    %481 = vmatpush1.bf16.msra.mxu0 0
    %482 = vmatprep.mubr.bf16.mxu0 0
    %483 = vmatmul.mubr.bf16.gmra.mrb[0].mxu0 %v423
    %v484 = vpop.f32.mrb[0].mxu0
    %v485 = vadd.f32 %v389, %v484
    %v486 = vpop.f32.mrb[0].mxu0
    %v487 = vpop.f32.mrb[0].mxu0
    %v488 = vadd.f32 %v390, %v487
    %v489 = vpop.f32.mrb[0].mxu0
    %490 = vmatprep.mubr.bf16.mxu0 0
    %491 = vmatmul.mubr.bf16.gmra.mrb[0].mxu0 %v426
    %v492 = vpop.f32.mrb[0].mxu0
    %v493 = vadd.f32 %v391, %v492
    %v494 = vpop.f32.mrb[0].mxu0
    %v495 = vpop.f32.mrb[0].mxu0
    %v496 = vadd.f32 %v392, %v495
    %v497 = vpop.f32.mrb[0].mxu0
    %498 = vmatprep.mubr.bf16.mxu0 0
    %499 = vmatmul.mubr.bf16.gmra.mrb[0].mxu0 %v429
    %v500 = vpop.f32.mrb[0].mxu0
    %v501 = vadd.f32 %v393, %v500
    %v502 = vpop.f32.mrb[0].mxu0
    %v503 = vpop.f32.mrb[0].mxu0
    %v504 = vadd.f32 %v394, %v503
    %v505 = vpop.f32.mrb[0].mxu0
    %506 = vmatprep.mubr.bf16.mxu0 0
    %507 = vmatmul.mubr.bf16.gmra.mrb[0].mxu0 %v432
    %v508 = vpop.f32.mrb[0].mxu0
    %v509 = vadd.f32 %v395, %v508
    %v510 = vpop.f32.mrb[0].mxu0
    %v511 = vpop.f32.mrb[0].mxu0
    %v512 = vadd.f32 %v396, %v511
    %v513 = vpop.f32.mrb[0].mxu0
    %514 = vmatprep.mubr.bf16.mxu0 0
    %515 = vmatmul.mubr.bf16.gmra.mrb[0].mxu0 %v435
    %v516 = vpop.f32.mrb[0].mxu0
    %v517 = vadd.f32 %v397, %v516
    %v518 = vpop.f32.mrb[0].mxu0
    %v519 = vpop.f32.mrb[0].mxu0
    %v520 = vadd.f32 %v398, %v519
    %v521 = vpop.f32.mrb[0].mxu0
    %522 = vmatprep.mubr.bf16.mxu0 0
    %523 = vmatmul.mubr.bf16.gmra.mrb[0].mxu0 %v438
    %v524 = vpop.f32.mrb[0].mxu0
    %v525 = vadd.f32 %v399, %v524
    %v526 = vpop.f32.mrb[0].mxu0
    %v527 = vpop.f32.mrb[0].mxu0
    %v528 = vadd.f32 %v400, %v527
    %v529 = vpop.f32.mrb[0].mxu0
    %530 = vmatprep.mubr.bf16.mxu0 0
    %531 = vmatmul.mubr.bf16.gmra.mrb[0].mxu0 %v441
    %v532 = vpop.f32.mrb[0].mxu0
    %v533 = vadd.f32 %v401, %v532
    %v534 = vpop.f32.mrb[0].mxu0
    %v535 = vpop.f32.mrb[0].mxu0
    %v536 = vadd.f32 %v402, %v535
    %v537 = vpop.f32.mrb[0].mxu0
    %538 = vmatprep.mubr.bf16.mxu0 0
    %539 = vmatmul.mubr.bf16.gmra.mrb[0].mxu0 %v444
    %v540 = vpop.f32.mrb[0].mxu0
    %v541 = vadd.f32 %v403, %v540
    %v542 = vpop.f32.mrb[0].mxu0
    %v543 = vpop.f32.mrb[0].mxu0
    %v544 = vadd.f32 %v404, %v543
    %v545 = vpop.f32.mrb[0].mxu0
    %546 = vdwg.mxu0
    %547 = vmax.xlane.f32.xlu0 %v485
    %v548 = vpop.xlane.xlu0 %547
    %549 = vmax.xlane.f32.xlu0 %v488
    %v550 = vpop.xlane.xlu0 %549
    %551 = vmax.xlane.f32.xlu0 %v493
    %v552 = vpop.xlane.xlu0 %551
    %553 = vmax.xlane.f32.xlu0 %v496
    %v554 = vpop.xlane.xlu0 %553
    %555 = vmax.xlane.f32.xlu0 %v501
    %v556 = vpop.xlane.xlu0 %555
    %557 = vmax.xlane.f32.xlu0 %v504
    %v558 = vpop.xlane.xlu0 %557
    %559 = vmax.xlane.f32.xlu0 %v509
    %v560 = vpop.xlane.xlu0 %559
    %561 = vmax.xlane.f32.xlu0 %v512
    %v562 = vpop.xlane.xlu0 %561
    %563 = vmax.xlane.f32.xlu0 %v517
    %v564 = vpop.xlane.xlu0 %563
    %565 = vmax.xlane.f32.xlu0 %v520
    %v566 = vpop.xlane.xlu0 %565
    %567 = vmax.xlane.f32.xlu0 %v525
    %v568 = vpop.xlane.xlu0 %567
    %569 = vmax.xlane.f32.xlu0 %v528
    %v570 = vpop.xlane.xlu0 %569
    %571 = vmax.xlane.f32.xlu0 %v533
    %v572 = vpop.xlane.xlu0 %571
    %573 = vmax.xlane.f32.xlu0 %v536
    %v574 = vpop.xlane.xlu0 %573
    %575 = vmax.xlane.f32.xlu0 %v541
    %v576 = vpop.xlane.xlu0 %575
    %577 = vmax.xlane.f32.xlu0 %v544
    %v578 = vpop.xlane.xlu0 %577
    %v579 = vsub.f32 %v485, %v548
    %v580 = vsub.f32 %v488, %v550
    %v581 = vsub.f32 %v493, %v552
    %v582 = vsub.f32 %v496, %v554
    %v583 = vsub.f32 %v501, %v556
    %v584 = vsub.f32 %v504, %v558
    %v585 = vsub.f32 %v509, %v560
    %v586 = vsub.f32 %v512, %v562
    %v587 = vsub.f32 %v517, %v564
    %v588 = vsub.f32 %v520, %v566
    %v589 = vsub.f32 %v525, %v568
    %v590 = vsub.f32 %v528, %v570
    %v591 = vsub.f32 %v533, %v572
    %v592 = vsub.f32 %v536, %v574
    %v593 = vsub.f32 %v541, %v576
    %v594 = vsub.f32 %v544, %v578
    %v595 = vmul.f32 %v579, 1.442695
    %v596 = vpow.pop %v595
    %v597 = vmul.f32 %v580, 1.442695
    %v598 = vpow.pop %v597
    %v599 = vmul.f32 %v581, 1.442695
    %v600 = vpow.pop %v599
    %v601 = vmul.f32 %v582, 1.442695
    %v602 = vpow.pop %v601
    %v603 = vmul.f32 %v583, 1.442695
    %v604 = vpow.pop %v603
    %v605 = vmul.f32 %v584, 1.442695
    %v606 = vpow.pop %v605
    %v607 = vmul.f32 %v585, 1.442695
    %v608 = vpow.pop %v607
    %v609 = vmul.f32 %v586, 1.442695
    %v610 = vpow.pop %v609
    %v611 = vmul.f32 %v587, 1.442695
    %v612 = vpow.pop %v611
    %v613 = vmul.f32 %v588, 1.442695
    %v614 = vpow.pop %v613
    %v615 = vmul.f32 %v589, 1.442695
    %v616 = vpow.pop %v615
    %v617 = vmul.f32 %v590, 1.442695
    %v618 = vpow.pop %v617
    %v619 = vmul.f32 %v591, 1.442695
    %v620 = vpow.pop %v619
    %v621 = vmul.f32 %v592, 1.442695
    %v622 = vpow.pop %v621
    %v623 = vmul.f32 %v593, 1.442695
    %v624 = vpow.pop %v623
    %v625 = vmul.f32 %v594, 1.442695
    %v626 = vpow.pop %v625
    %627 = vadd.xlane.f32.xlu0 %v596
    %v628 = vpop.xlane.xlu0 %627
    %629 = vadd.xlane.f32.xlu0 %v598
    %v630 = vpop.xlane.xlu0 %629
    %631 = vadd.xlane.f32.xlu0 %v600
    %v632 = vpop.xlane.xlu0 %631
    %633 = vadd.xlane.f32.xlu0 %v602
    %v634 = vpop.xlane.xlu0 %633
    %635 = vadd.xlane.f32.xlu0 %v604
    %v636 = vpop.xlane.xlu0 %635
    %637 = vadd.xlane.f32.xlu0 %v606
    %v638 = vpop.xlane.xlu0 %637
    %639 = vadd.xlane.f32.xlu0 %v608
    %v640 = vpop.xlane.xlu0 %639
    %641 = vadd.xlane.f32.xlu0 %v610
    %v642 = vpop.xlane.xlu0 %641
    %643 = vadd.xlane.f32.xlu0 %v612
    %v644 = vpop.xlane.xlu0 %643
    %645 = vadd.xlane.f32.xlu0 %v614
    %v646 = vpop.xlane.xlu0 %645
    %647 = vadd.xlane.f32.xlu0 %v616
    %v648 = vpop.xlane.xlu0 %647
    %649 = vadd.xlane.f32.xlu0 %v618
    %v650 = vpop.xlane.xlu0 %649
    %651 = vadd.xlane.f32.xlu0 %v620
    %v652 = vpop.xlane.xlu0 %651
    %653 = vadd.xlane.f32.xlu0 %v622
    %v654 = vpop.xlane.xlu0 %653
    %655 = vadd.xlane.f32.xlu0 %v624
    %v656 = vpop.xlane.xlu0 %655
    %657 = vadd.xlane.f32.xlu0 %v626
    %v658 = vpop.xlane.xlu0 %657
    %v659 = vrcp.pop %v628
    %v660 = vrcp.pop %v630
    %v661 = vrcp.pop %v632
    %v662 = vrcp.pop %v634
    %v663 = vrcp.pop %v636
    %v664 = vrcp.pop %v638
    %v665 = vrcp.pop %v640
    %v666 = vrcp.pop %v642
    %v667 = vrcp.pop %v644
    %v668 = vrcp.pop %v646
    %v669 = vrcp.pop %v648
    %v670 = vrcp.pop %v650
    %v671 = vrcp.pop %v652
    %v672 = vrcp.pop %v654
    %v673 = vrcp.pop %v656
    %v674 = vrcp.pop %v658
    %v675 = vmul.f32 %v596, %v659
    %v676 = vmul.f32 %v598, %v660
    %v677 = vmul.f32 %v600, %v661
    %v678 = vmul.f32 %v602, %v662
    %v679 = vmul.f32 %v604, %v663
    %v680 = vmul.f32 %v606, %v664
    %v681 = vmul.f32 %v608, %v665
    %v682 = vmul.f32 %v610, %v666
    %v683 = vmul.f32 %v612, %v667
    %v684 = vmul.f32 %v614, %v668
    %v685 = vmul.f32 %v616, %v669
    %v686 = vmul.f32 %v618, %v670
    %v687 = vmul.f32 %v620, %v671
    %v688 = vmul.f32 %v622, %v672
    %v689 = vmul.f32 %v624, %v673
    %v690 = vmul.f32 %v626, %v674
    %v691 = vpack.c.bf16 %v676, %v675
    %v692 = vpack.c.bf16 %v678, %v677
    %v693 = vpack.c.bf16 %v680, %v679
    %v694 = vpack.c.bf16 %v682, %v681
    %v695 = vpack.c.bf16 %v684, %v683
    %v696 = vpack.c.bf16 %v686, %v685
    %v697 = vpack.c.bf16 %v688, %v687
    %v698 = vpack.c.bf16 %v690, %v689
    %699 = vmatprep.subr.bf16.mxu0 0
    %700 = vmatpush1.bf16.xpose.msra.mxu0 %v691
    %701 = vmatprep.subr.bf16.mxu0 0
    %702 = vmatpush1.bf16.xpose.msra.mxu0 %v692
    %703 = vmatprep.subr.bf16.mxu0 0
    %704 = vmatpush1.bf16.xpose.msra.mxu0 %v693
    %705 = vmatprep.subr.bf16.mxu0 0
    %706 = vmatpush1.bf16.xpose.msra.mxu0 %v694
    %707 = vmatprep.subr.bf16.mxu0 0
    %708 = vmatpush1.bf16.xpose.msra.mxu0 %v695
    %709 = vmatprep.subr.bf16.mxu0 0
    %710 = vmatpush1.bf16.xpose.msra.mxu0 %v696
    %711 = vmatprep.subr.bf16.mxu0 0
    %712 = vmatpush1.bf16.xpose.msra.mxu0 %v697
    %713 = vmatprep.subr.bf16.mxu0 0
    %714 = vmatpush1.bf16.xpose.msra.mxu0 %v698
    %715 = vmatprep.subr.bf16.mxu0 0
    %716 = vmatpush1.bf16.xpose.msra.mxu0 0
    %717 = vmatprep.subr.bf16.mxu0 0
    %718 = vmatpush1.bf16.xpose.msra.mxu0 0
    %719 = vmatprep.subr.bf16.mxu0 0
    %720 = vmatpush1.bf16.xpose.msra.mxu0 0
    %721 = vmatprep.subr.bf16.mxu0 0
    %722 = vmatpush1.bf16.xpose.msra.mxu0 0
    %723 = vmatprep.subr.bf16.mxu0 0
    %724 = vmatpush1.bf16.xpose.msra.mxu0 0
    %725 = vmatprep.subr.bf16.mxu0 0
    %726 = vmatpush1.bf16.xpose.msra.mxu0 0
    %727 = vmatprep.subr.bf16.mxu0 0
    %728 = vmatpush1.bf16.xpose.msra.mxu0 0
    %729 = vmatprep.subr.bf16.mxu0 0
    %730 = vmatpush1.bf16.xpose.msra.mxu0 0
    %731 = vmatprep.mubr.bf16.mxu0 0
    %732 = vmatmul.mubr.bf16.gmra.mrb[0].mxu0 %v369
    %v733 = vpop.f32.mrb[0].mxu0
    %v734 = vadd.f32 0.0, %v733
    %v735 = vpop.f32.mrb[0].mxu0
    %v736 = vpop.f32.mrb[0].mxu0
    %v737 = vpop.f32.mrb[0].mxu0
    %738 = vdwg.mxu0
    %s739 = scalar_lea.vmem [#allocation3], %s356
    %740 = vst [vmem:[%s739] sm:$0xff] %v734
  $region34: #{swin_block_forward.1} parent=0 // loop_footer
    %s355 = sadd.s32 1, %s351
  $region35: #{swin_block_forward.1} parent=0 // loop_footer_branch
    %350 = sbr.rel target = $region31
  $region36: #{swin_block_forward.1} parent=0 // loop_exit
    _
  %v741 = vld [vmem:[#allocation3] sm:$0xff]
  %v742 = vld [vmem:[#allocation3 + $0x8] sm:$0xff]
  %v743 = vld [vmem:[#allocation3 + $0x10] sm:$0xff]
  %v744 = vld [vmem:[#allocation3 + $0x18] sm:$0xff]
  %v745 = vpack.c.bf16 %v742, %v741
  %v746 = vpack.c.bf16 %v744, %v743
  %v747 = vld [vmem:[%s3] sm:$0xf]
  %v748 = vld [vmem:[%s3 + $0x4] sm:$0xf]
  %v749 = vld [vmem:[%s3 + $0x8] sm:$0xf]
  %v750 = vld [vmem:[%s3 + $0xc] sm:$0xf]
  %v751 = vld [vmem:[%s1 + $0xa0] sm:$0xff]
  %v752 = vld [vmem:[%s1 + $0xa8] sm:$0xff]
  %v753 = vld [vmem:[%s1 + $0xb0] sm:$0xff]
  %v754 = vld [vmem:[%s1 + $0xb8] sm:$0xff]
  %756 = vset.pattern.permute.xlu0 0
  %757 = vperm.xlu0 %756, %v751
  %v758 = vpop.permute.xlu0 %757
  %761 = vset.pattern.permute.xlu0 0
  %762 = vperm.xlu0 %761, %v752
  %v763 = vpop.permute.xlu0 %762
  %766 = vset.pattern.permute.xlu0 0
  %767 = vperm.xlu0 %766, %v753
  %v768 = vpop.permute.xlu0 %767
  %771 = vset.pattern.permute.xlu0 0
  %772 = vperm.xlu0 %771, %v754
  %v773 = vpop.permute.xlu0 %772
  %v779 = vunpack.c.l.b16 %v747
  %v780 = vunpack.c.l.b16 %v748
  %v781 = vunpack.c.l.b16 %v749
  %v782 = vunpack.c.l.b16 %v750
  %v783 = vpack.c.b16 %v780, %v779
  %v784 = vpack.c.b16 %v782, %v781
  %v786 = vsel %vm238, %v783, 0
  %v789 = vsel %vm238, %v784, 0
  %791 = vmatprep.subr.bf16.mxu0 0
  %792 = vmatpush1.bf16.msra.mxu0 %v745
  %793 = vmatprep.subr.bf16.mxu0 0
  %794 = vmatpush1.bf16.msra.mxu0 %v746
  %795 = vmatprep.subr.bf16.mxu0 0
  %796 = vmatpush1.bf16.msra.mxu0 0
  %797 = vmatprep.subr.bf16.mxu0 0
  %798 = vmatpush1.bf16.msra.mxu0 0
  %799 = vmatprep.subr.bf16.mxu0 0
  %800 = vmatpush1.bf16.msra.mxu0 0
  %801 = vmatprep.subr.bf16.mxu0 0
  %802 = vmatpush1.bf16.msra.mxu0 0
  %803 = vmatprep.subr.bf16.mxu0 0
  %804 = vmatpush1.bf16.msra.mxu0 0
  %805 = vmatprep.subr.bf16.mxu0 0
  %806 = vmatpush1.bf16.msra.mxu0 0
  %807 = vmatprep.subr.bf16.mxu0 0
  %808 = vmatpush1.bf16.msra.mxu0 0
  %809 = vmatprep.subr.bf16.mxu0 0
  %810 = vmatpush1.bf16.msra.mxu0 0
  %811 = vmatprep.subr.bf16.mxu0 0
  %812 = vmatpush1.bf16.msra.mxu0 0
  %813 = vmatprep.subr.bf16.mxu0 0
  %814 = vmatpush1.bf16.msra.mxu0 0
  %815 = vmatprep.subr.bf16.mxu0 0
  %816 = vmatpush1.bf16.msra.mxu0 0
  %817 = vmatprep.subr.bf16.mxu0 0
  %818 = vmatpush1.bf16.msra.mxu0 0
  %819 = vmatprep.subr.bf16.mxu0 0
  %820 = vmatpush1.bf16.msra.mxu0 0
  %821 = vmatprep.subr.bf16.mxu0 0
  %822 = vmatpush1.bf16.msra.mxu0 0
  %823 = vmatprep.mubr.bf16.mxu0 0
  %824 = vmatmul.mubr.bf16.gmra.mrb[0].mxu0 %v786
  %v825 = vpop.f32.mrb[0].mxu0
  %v826 = vadd.f32 %v758, %v825
  %v827 = vpop.f32.mrb[0].mxu0
  %v828 = vpop.f32.mrb[0].mxu0
  %v829 = vadd.f32 %v763, %v828
  %v830 = vpop.f32.mrb[0].mxu0
  %831 = vmatprep.mubr.bf16.mxu0 0
  %832 = vmatmul.mubr.bf16.gmra.mrb[0].mxu0 %v789
  %v833 = vpop.f32.mrb[0].mxu0
  %v834 = vadd.f32 %v768, %v833
  %v835 = vpop.f32.mrb[0].mxu0
  %v836 = vpop.f32.mrb[0].mxu0
  %v837 = vadd.f32 %v773, %v836
  %v838 = vpop.f32.mrb[0].mxu0
  %839 = vdwg.mxu0
  %v840 = vadd.f32 %v27, %v826
  %v841 = vadd.f32 %v28, %v829
  %v842 = vadd.f32 %v29, %v834
  %v843 = vadd.f32 %v30, %v837
  %v844 = vld [vmem:[%s1 + $0xc0] sm:$0xff]
  %v845 = vld [vmem:[%s1 + $0xc8] sm:$0xff]
  %v846 = vld [vmem:[%s1 + $0xd0] sm:$0xff]
  %v847 = vld [vmem:[%s1 + $0xd8] sm:$0xff]
  %v848 = vld [vmem:[%s1 + $0xe0] sm:$0xff]
  %v849 = vld [vmem:[%s1 + $0xe8] sm:$0xff]
  %v850 = vld [vmem:[%s1 + $0xf0] sm:$0xff]
  %v851 = vld [vmem:[%s1 + $0xf8] sm:$0xff]
  %v852 = vadd.f32 %v840, %v841
  %v853 = vadd.f32 %v852, %v842
  %v854 = vadd.f32 %v853, %v843
  %v855 = vrot.slane %v854, 4
  %v856 = vadd.f32 %v854, %v855
  %v857 = vrot.slane %v856, 2
  %v858 = vadd.f32 %v856, %v857
  %v859 = vrot.slane %v858, 1
  %v860 = vadd.f32 %v858, %v859
  %v861 = vmul.f32 %v860, %v48
  %v862 = vsub.f32 %v840, %v861
  %v863 = vsub.f32 %v841, %v861
  %v864 = vsub.f32 %v842, %v861
  %v865 = vsub.f32 %v843, %v861
  %v866 = vmul.f32 %v862, %v862
  %v867 = vmul.f32 %v863, %v863
  %v868 = vmul.f32 %v864, %v864
  %v869 = vmul.f32 %v865, %v865
  %v870 = vadd.f32 %v866, %v867
  %v871 = vadd.f32 %v870, %v868
  %v872 = vadd.f32 %v871, %v869
  %v873 = vrot.slane %v872, 4
  %v874 = vadd.f32 %v872, %v873
  %v875 = vrot.slane %v874, 2
  %v876 = vadd.f32 %v874, %v875
  %v877 = vrot.slane %v876, 1
  %v878 = vadd.f32 %v876, %v877
  %v879 = vmul.f32 %v878, %v48
  %v880 = vadd.f32 %v879, 1e-05
  %v881 = vrsqrt.pop %v880
  %v882 = vmul.f32 %v862, %v881
  %v883 = vmul.f32 %v863, %v881
  %v884 = vmul.f32 %v864, %v881
  %v885 = vmul.f32 %v865, %v881
  %887 = vset.pattern.permute.xlu0 0
  %888 = vperm.xlu0 %887, %v844
  %v889 = vpop.permute.xlu0 %888
  %892 = vset.pattern.permute.xlu0 0
  %893 = vperm.xlu0 %892, %v845
  %v894 = vpop.permute.xlu0 %893
  %897 = vset.pattern.permute.xlu0 0
  %898 = vperm.xlu0 %897, %v846
  %v899 = vpop.permute.xlu0 %898
  %902 = vset.pattern.permute.xlu0 0
  %903 = vperm.xlu0 %902, %v847
  %v904 = vpop.permute.xlu0 %903
  %v906 = vmul.f32 %v882, %v889
  %v907 = vmul.f32 %v883, %v894
  %v908 = vmul.f32 %v884, %v899
  %v909 = vmul.f32 %v885, %v904
  %911 = vset.pattern.permute.xlu0 0
  %912 = vperm.xlu0 %911, %v848
  %v913 = vpop.permute.xlu0 %912
  %916 = vset.pattern.permute.xlu0 0
  %917 = vperm.xlu0 %916, %v849
  %v918 = vpop.permute.xlu0 %917
  %921 = vset.pattern.permute.xlu0 0
  %922 = vperm.xlu0 %921, %v850
  %v923 = vpop.permute.xlu0 %922
  %926 = vset.pattern.permute.xlu0 0
  %927 = vperm.xlu0 %926, %v851
  %v928 = vpop.permute.xlu0 %927
  %v930 = vadd.f32 %v906, %v913
  %v931 = vadd.f32 %v907, %v918
  %v932 = vadd.f32 %v908, %v923
  %v933 = vadd.f32 %v909, %v928
  %v934 = vpack.c.bf16 %v931, %v930
  %v935 = vpack.c.bf16 %v933, %v932
  %v936 = vld [vmem:[%s5] sm:$0xf]
  %v937 = vld [vmem:[%s5 + $0x4] sm:$0xf]
  %v938 = vld [vmem:[%s5 + $0x8] sm:$0xf]
  %v939 = vld [vmem:[%s5 + $0xc] sm:$0xf]
  %v940 = vld [vmem:[%s5 + $0x10] sm:$0xf]
  %v941 = vld [vmem:[%s5 + $0x14] sm:$0xf]
  %v942 = vld [vmem:[%s5 + $0x18] sm:$0xf]
  %v943 = vld [vmem:[%s5 + $0x1c] sm:$0xf]
  %v944 = vld [vmem:[%s5 + $0x20] sm:$0xf]
  %v945 = vld [vmem:[%s5 + $0x24] sm:$0xf]
  %v946 = vld [vmem:[%s5 + $0x28] sm:$0xf]
  %v947 = vld [vmem:[%s5 + $0x2c] sm:$0xf]
  %v948 = vld [vmem:[%s5 + $0x30] sm:$0xf]
  %v949 = vld [vmem:[%s5 + $0x34] sm:$0xf]
  %v950 = vld [vmem:[%s5 + $0x38] sm:$0xf]
  %v951 = vld [vmem:[%s5 + $0x3c] sm:$0xf]
  %v952 = vld [vmem:[%s1 + $0x100] sm:$0xff]
  %v953 = vld [vmem:[%s1 + $0x108] sm:$0xff]
  %v954 = vld [vmem:[%s1 + $0x110] sm:$0xff]
  %v955 = vld [vmem:[%s1 + $0x118] sm:$0xff]
  %v956 = vld [vmem:[%s1 + $0x120] sm:$0xff]
  %v957 = vld [vmem:[%s1 + $0x128] sm:$0xff]
  %v958 = vld [vmem:[%s1 + $0x130] sm:$0xff]
  %v959 = vld [vmem:[%s1 + $0x138] sm:$0xff]
  %v960 = vld [vmem:[%s1 + $0x140] sm:$0xff]
  %v961 = vld [vmem:[%s1 + $0x148] sm:$0xff]
  %v962 = vld [vmem:[%s1 + $0x150] sm:$0xff]
  %v963 = vld [vmem:[%s1 + $0x158] sm:$0xff]
  %v964 = vld [vmem:[%s1 + $0x160] sm:$0xff]
  %v965 = vld [vmem:[%s1 + $0x168] sm:$0xff]
  %v966 = vld [vmem:[%s1 + $0x170] sm:$0xff]
  %v967 = vld [vmem:[%s1 + $0x178] sm:$0xff]
  %969 = vset.pattern.permute.xlu0 0
  %970 = vperm.xlu0 %969, %v952
  %v971 = vpop.permute.xlu0 %970
  %974 = vset.pattern.permute.xlu0 0
  %975 = vperm.xlu0 %974, %v953
  %v976 = vpop.permute.xlu0 %975
  %979 = vset.pattern.permute.xlu0 0
  %980 = vperm.xlu0 %979, %v954
  %v981 = vpop.permute.xlu0 %980
  %984 = vset.pattern.permute.xlu0 0
  %985 = vperm.xlu0 %984, %v955
  %v986 = vpop.permute.xlu0 %985
  %989 = vset.pattern.permute.xlu0 0
  %990 = vperm.xlu0 %989, %v956
  %v991 = vpop.permute.xlu0 %990
  %994 = vset.pattern.permute.xlu0 0
  %995 = vperm.xlu0 %994, %v957
  %v996 = vpop.permute.xlu0 %995
  %999 = vset.pattern.permute.xlu0 0
  %1000 = vperm.xlu0 %999, %v958
  %v1001 = vpop.permute.xlu0 %1000
  %1004 = vset.pattern.permute.xlu0 0
  %1005 = vperm.xlu0 %1004, %v959
  %v1006 = vpop.permute.xlu0 %1005
  %1009 = vset.pattern.permute.xlu0 0
  %1010 = vperm.xlu0 %1009, %v960
  %v1011 = vpop.permute.xlu0 %1010
  %1014 = vset.pattern.permute.xlu0 0
  %1015 = vperm.xlu0 %1014, %v961
  %v1016 = vpop.permute.xlu0 %1015
  %1019 = vset.pattern.permute.xlu0 0
  %1020 = vperm.xlu0 %1019, %v962
  %v1021 = vpop.permute.xlu0 %1020
  %1024 = vset.pattern.permute.xlu0 0
  %1025 = vperm.xlu0 %1024, %v963
  %v1026 = vpop.permute.xlu0 %1025
  %1029 = vset.pattern.permute.xlu0 0
  %1030 = vperm.xlu0 %1029, %v964
  %v1031 = vpop.permute.xlu0 %1030
  %1034 = vset.pattern.permute.xlu0 0
  %1035 = vperm.xlu0 %1034, %v965
  %v1036 = vpop.permute.xlu0 %1035
  %1039 = vset.pattern.permute.xlu0 0
  %1040 = vperm.xlu0 %1039, %v966
  %v1041 = vpop.permute.xlu0 %1040
  %1044 = vset.pattern.permute.xlu0 0
  %1045 = vperm.xlu0 %1044, %v967
  %v1046 = vpop.permute.xlu0 %1045
  %v1064 = vunpack.c.l.b16 %v936
  %v1065 = vunpack.c.l.b16 %v937
  %v1066 = vunpack.c.l.b16 %v938
  %v1067 = vunpack.c.l.b16 %v939
  %v1068 = vunpack.c.l.b16 %v940
  %v1069 = vunpack.c.l.b16 %v941
  %v1070 = vunpack.c.l.b16 %v942
  %v1071 = vunpack.c.l.b16 %v943
  %v1072 = vunpack.c.l.b16 %v944
  %v1073 = vunpack.c.l.b16 %v945
  %v1074 = vunpack.c.l.b16 %v946
  %v1075 = vunpack.c.l.b16 %v947
  %v1076 = vunpack.c.l.b16 %v948
  %v1077 = vunpack.c.l.b16 %v949
  %v1078 = vunpack.c.l.b16 %v950
  %v1079 = vunpack.c.l.b16 %v951
  %v1080 = vpack.c.b16 %v1065, %v1064
  %v1081 = vpack.c.b16 %v1067, %v1066
  %v1082 = vpack.c.b16 %v1069, %v1068
  %v1083 = vpack.c.b16 %v1071, %v1070
  %v1084 = vpack.c.b16 %v1073, %v1072
  %v1085 = vpack.c.b16 %v1075, %v1074
  %v1086 = vpack.c.b16 %v1077, %v1076
  %v1087 = vpack.c.b16 %v1079, %v1078
  %v1089 = vsel %vm238, %v1080, 0
  %v1092 = vsel %vm238, %v1081, 0
  %v1095 = vsel %vm238, %v1082, 0
  %v1098 = vsel %vm238, %v1083, 0
  %v1101 = vsel %vm238, %v1084, 0
  %v1104 = vsel %vm238, %v1085, 0
  %v1107 = vsel %vm238, %v1086, 0
  %v1110 = vsel %vm238, %v1087, 0
  %1112 = vmatprep.subr.bf16.mxu0 0
  %1113 = vmatpush1.bf16.msra.mxu0 %v934
  %1114 = vmatprep.subr.bf16.mxu0 0
  %1115 = vmatpush1.bf16.msra.mxu0 %v935
  %1116 = vmatprep.subr.bf16.mxu0 0
  %1117 = vmatpush1.bf16.msra.mxu0 0
  %1118 = vmatprep.subr.bf16.mxu0 0
  %1119 = vmatpush1.bf16.msra.mxu0 0
  %1120 = vmatprep.subr.bf16.mxu0 0
  %1121 = vmatpush1.bf16.msra.mxu0 0
  %1122 = vmatprep.subr.bf16.mxu0 0
  %1123 = vmatpush1.bf16.msra.mxu0 0
  %1124 = vmatprep.subr.bf16.mxu0 0
  %1125 = vmatpush1.bf16.msra.mxu0 0
  %1126 = vmatprep.subr.bf16.mxu0 0
  %1127 = vmatpush1.bf16.msra.mxu0 0
  %1128 = vmatprep.subr.bf16.mxu0 0
  %1129 = vmatpush1.bf16.msra.mxu0 0
  %1130 = vmatprep.subr.bf16.mxu0 0
  %1131 = vmatpush1.bf16.msra.mxu0 0
  %1132 = vmatprep.subr.bf16.mxu0 0
  %1133 = vmatpush1.bf16.msra.mxu0 0
  %1134 = vmatprep.subr.bf16.mxu0 0
  %1135 = vmatpush1.bf16.msra.mxu0 0
  %1136 = vmatprep.subr.bf16.mxu0 0
  %1137 = vmatpush1.bf16.msra.mxu0 0
  %1138 = vmatprep.subr.bf16.mxu0 0
  %1139 = vmatpush1.bf16.msra.mxu0 0
  %1140 = vmatprep.subr.bf16.mxu0 0
  %1141 = vmatpush1.bf16.msra.mxu0 0
  %1142 = vmatprep.subr.bf16.mxu0 0
  %1143 = vmatpush1.bf16.msra.mxu0 0
  %1144 = vmatprep.mubr.bf16.mxu0 0
  %1145 = vmatmul.mubr.bf16.gmra.mrb[0].mxu0 %v1089
  %v1146 = vpop.f32.mrb[0].mxu0
  %v1147 = vadd.f32 %v971, %v1146
  %v1148 = vpop.f32.mrb[0].mxu0
  %v1149 = vpop.f32.mrb[0].mxu0
  %v1150 = vadd.f32 %v976, %v1149
  %v1151 = vpop.f32.mrb[0].mxu0
  %1152 = vmatprep.mubr.bf16.mxu0 0
  %1153 = vmatmul.mubr.bf16.gmra.mrb[0].mxu0 %v1092
  %v1154 = vpop.f32.mrb[0].mxu0
  %v1155 = vadd.f32 %v981, %v1154
  %v1156 = vpop.f32.mrb[0].mxu0
  %v1157 = vpop.f32.mrb[0].mxu0
  %v1158 = vadd.f32 %v986, %v1157
  %v1159 = vpop.f32.mrb[0].mxu0
  %1160 = vmatprep.mubr.bf16.mxu0 0
  %1161 = vmatmul.mubr.bf16.gmra.mrb[0].mxu0 %v1095
  %v1162 = vpop.f32.mrb[0].mxu0
  %v1163 = vadd.f32 %v991, %v1162
  %v1164 = vpop.f32.mrb[0].mxu0
  %v1165 = vpop.f32.mrb[0].mxu0
  %v1166 = vadd.f32 %v996, %v1165
  %v1167 = vpop.f32.mrb[0].mxu0
  %1168 = vmatprep.mubr.bf16.mxu0 0
  %1169 = vmatmul.mubr.bf16.gmra.mrb[0].mxu0 %v1098
  %v1170 = vpop.f32.mrb[0].mxu0
  %v1171 = vadd.f32 %v1001, %v1170
  %v1172 = vpop.f32.mrb[0].mxu0
  %v1173 = vpop.f32.mrb[0].mxu0
  %v1174 = vadd.f32 %v1006, %v1173
  %v1175 = vpop.f32.mrb[0].mxu0
  %1176 = vmatprep.mubr.bf16.mxu0 0
  %1177 = vmatmul.mubr.bf16.gmra.mrb[0].mxu0 %v1101
  %v1178 = vpop.f32.mrb[0].mxu0
  %v1179 = vadd.f32 %v1011, %v1178
  %v1180 = vpop.f32.mrb[0].mxu0
  %v1181 = vpop.f32.mrb[0].mxu0
  %v1182 = vadd.f32 %v1016, %v1181
  %v1183 = vpop.f32.mrb[0].mxu0
  %1184 = vmatprep.mubr.bf16.mxu0 0
  %1185 = vmatmul.mubr.bf16.gmra.mrb[0].mxu0 %v1104
  %v1186 = vpop.f32.mrb[0].mxu0
  %v1187 = vadd.f32 %v1021, %v1186
  %v1188 = vpop.f32.mrb[0].mxu0
  %v1189 = vpop.f32.mrb[0].mxu0
  %v1190 = vadd.f32 %v1026, %v1189
  %v1191 = vpop.f32.mrb[0].mxu0
  %1192 = vmatprep.mubr.bf16.mxu0 0
  %1193 = vmatmul.mubr.bf16.gmra.mrb[0].mxu0 %v1107
  %v1194 = vpop.f32.mrb[0].mxu0
  %v1195 = vadd.f32 %v1031, %v1194
  %v1196 = vpop.f32.mrb[0].mxu0
  %v1197 = vpop.f32.mrb[0].mxu0
  %v1198 = vadd.f32 %v1036, %v1197
  %v1199 = vpop.f32.mrb[0].mxu0
  %1200 = vmatprep.mubr.bf16.mxu0 0
  %1201 = vmatmul.mubr.bf16.gmra.mrb[0].mxu0 %v1110
  %v1202 = vpop.f32.mrb[0].mxu0
  %v1203 = vadd.f32 %v1041, %v1202
  %v1204 = vpop.f32.mrb[0].mxu0
  %v1205 = vpop.f32.mrb[0].mxu0
  %v1206 = vadd.f32 %v1046, %v1205
  %v1207 = vpop.f32.mrb[0].mxu0
  %1208 = vdwg.mxu0
  %v1209 = vand.u32 2147483647, %v1147
  %v1210 = vand.u32 2147483647, %v1150
  %v1211 = vand.u32 2147483647, %v1155
  %v1212 = vand.u32 2147483647, %v1158
  %v1213 = vand.u32 2147483647, %v1163
  %v1214 = vand.u32 2147483647, %v1166
  %v1215 = vand.u32 2147483647, %v1171
  %v1216 = vand.u32 2147483647, %v1174
  %v1217 = vand.u32 2147483647, %v1179
  %v1218 = vand.u32 2147483647, %v1182
  %v1219 = vand.u32 2147483647, %v1187
  %v1220 = vand.u32 2147483647, %v1190
  %v1221 = vand.u32 2147483647, %v1195
  %v1222 = vand.u32 2147483647, %v1198
  %v1223 = vand.u32 2147483647, %v1203
  %v1224 = vand.u32 2147483647, %v1206
  %v1225 = vmul.f32 %v1209, 0.70710677
  %v1226 = vmul.f32 %v1210, 0.70710677
  %v1227 = vmul.f32 %v1211, 0.70710677
  %v1228 = vmul.f32 %v1212, 0.70710677
  %v1229 = vmul.f32 %v1213, 0.70710677
  %v1230 = vmul.f32 %v1214, 0.70710677
  %v1231 = vmul.f32 %v1215, 0.70710677
  %v1232 = vmul.f32 %v1216, 0.70710677
  %v1233 = vmul.f32 %v1217, 0.70710677
  %v1234 = vmul.f32 %v1218, 0.70710677
  %v1235 = vmul.f32 %v1219, 0.70710677
  %v1236 = vmul.f32 %v1220, 0.70710677
  %v1237 = vmul.f32 %v1221, 0.70710677
  %v1238 = vmul.f32 %v1222, 0.70710677
  %v1239 = vmul.f32 %v1223, 0.70710677
  %v1240 = vmul.f32 %v1224, 0.70710677
  %v1241 = vmul.f32 %v1225, 0.3275911
  %v1242 = vmul.f32 %v1226, 0.3275911
  %v1243 = vmul.f32 %v1227, 0.3275911
  %v1244 = vmul.f32 %v1228, 0.3275911
  %v1245 = vmul.f32 %v1229, 0.3275911
  %v1246 = vmul.f32 %v1230, 0.3275911
  %v1247 = vmul.f32 %v1231, 0.3275911
  %v1248 = vmul.f32 %v1232, 0.3275911
  %v1249 = vmul.f32 %v1233, 0.3275911
  %v1250 = vmul.f32 %v1234, 0.3275911
  %v1251 = vmul.f32 %v1235, 0.3275911
  %v1252 = vmul.f32 %v1236, 0.3275911
  %v1253 = vmul.f32 %v1237, 0.3275911
  %v1254 = vmul.f32 %v1238, 0.3275911
  %v1255 = vmul.f32 %v1239, 0.3275911
  %v1256 = vmul.f32 %v1240, 0.3275911
  %v1257 = vadd.f32 %v1241, 1.0
  %v1258 = vadd.f32 %v1242, 1.0
  %v1259 = vadd.f32 %v1243, 1.0
  %v1260 = vadd.f32 %v1244, 1.0
  %v1261 = vadd.f32 %v1245, 1.0
  %v1262 = vadd.f32 %v1246, 1.0
  %v1263 = vadd.f32 %v1247, 1.0
  %v1264 = vadd.f32 %v1248, 1.0
  %v1265 = vadd.f32 %v1249, 1.0
  %v1266 = vadd.f32 %v1250, 1.0
  %v1267 = vadd.f32 %v1251, 1.0
  %v1268 = vadd.f32 %v1252, 1.0
  %v1269 = vadd.f32 %v1253, 1.0
  %v1270 = vadd.f32 %v1254, 1.0
  %v1271 = vadd.f32 %v1255, 1.0
  %v1272 = vadd.f32 %v1256, 1.0
  %v1273 = vrcp.pop %v1257
  %v1274 = vrcp.pop %v1258
  %v1275 = vrcp.pop %v1259
  %v1276 = vrcp.pop %v1260
  %v1277 = vrcp.pop %v1261
  %v1278 = vrcp.pop %v1262
  %v1279 = vrcp.pop %v1263
  %v1280 = vrcp.pop %v1264
  %v1281 = vrcp.pop %v1265
  %v1282 = vrcp.pop %v1266
  %v1283 = vrcp.pop %v1267
  %v1284 = vrcp.pop %v1268
  %v1285 = vrcp.pop %v1269
  %v1286 = vrcp.pop %v1270
  %v1287 = vrcp.pop %v1271
  %v1288 = vrcp.pop %v1272
  %v1289 = vmul.f32 %v1273, 1.0614054
  %v1290 = vmul.f32 %v1274, 1.0614054
  %v1291 = vmul.f32 %v1275, 1.0614054
  %v1292 = vmul.f32 %v1276, 1.0614054
  %v1293 = vmul.f32 %v1277, 1.0614054
  %v1294 = vmul.f32 %v1278, 1.0614054
  %v1295 = vmul.f32 %v1279, 1.0614054
  %v1296 = vmul.f32 %v1280, 1.0614054
  %v1297 = vmul.f32 %v1281, 1.0614054
  %v1298 = vmul.f32 %v1282, 1.0614054
  %v1299 = vmul.f32 %v1283, 1.0614054
  %v1300 = vmul.f32 %v1284, 1.0614054
  %v1301 = vmul.f32 %v1285, 1.0614054
  %v1302 = vmul.f32 %v1286, 1.0614054
  %v1303 = vmul.f32 %v1287, 1.0614054
  %v1304 = vmul.f32 %v1288, 1.0614054
  %v1305 = vadd.f32 %v1289, -1.4531521
  %v1306 = vadd.f32 %v1290, -1.4531521
  %v1307 = vadd.f32 %v1291, -1.4531521
  %v1308 = vadd.f32 %v1292, -1.4531521
  %v1309 = vadd.f32 %v1293, -1.4531521
  %v1310 = vadd.f32 %v1294, -1.4531521
  %v1311 = vadd.f32 %v1295, -1.4531521
  %v1312 = vadd.f32 %v1296, -1.4531521
  %v1313 = vadd.f32 %v1297, -1.4531521
  %v1314 = vadd.f32 %v1298, -1.4531521
  %v1315 = vadd.f32 %v1299, -1.4531521
  %v1316 = vadd.f32 %v1300, -1.4531521
  %v1317 = vadd.f32 %v1301, -1.4531521
  %v1318 = vadd.f32 %v1302, -1.4531521
  %v1319 = vadd.f32 %v1303, -1.4531521
  %v1320 = vadd.f32 %v1304, -1.4531521
  %v1321 = vmul.f32 %v1305, %v1273
  %v1322 = vmul.f32 %v1306, %v1274
  %v1323 = vmul.f32 %v1307, %v1275
  %v1324 = vmul.f32 %v1308, %v1276
  %v1325 = vmul.f32 %v1309, %v1277
  %v1326 = vmul.f32 %v1310, %v1278
  %v1327 = vmul.f32 %v1311, %v1279
  %v1328 = vmul.f32 %v1312, %v1280
  %v1329 = vmul.f32 %v1313, %v1281
  %v1330 = vmul.f32 %v1314, %v1282
  %v1331 = vmul.f32 %v1315, %v1283
  %v1332 = vmul.f32 %v1316, %v1284
  %v1333 = vmul.f32 %v1317, %v1285
  %v1334 = vmul.f32 %v1318, %v1286
  %v1335 = vmul.f32 %v1319, %v1287
  %v1336 = vmul.f32 %v1320, %v1288
  %v1337 = vadd.f32 %v1321, 1.4214138
  %v1338 = vadd.f32 %v1322, 1.4214138
  %v1339 = vadd.f32 %v1323, 1.4214138
  %v1340 = vadd.f32 %v1324, 1.4214138
  %v1341 = vadd.f32 %v1325, 1.4214138
  %v1342 = vadd.f32 %v1326, 1.4214138
  %v1343 = vadd.f32 %v1327, 1.4214138
  %v1344 = vadd.f32 %v1328, 1.4214138
  %v1345 = vadd.f32 %v1329, 1.4214138
  %v1346 = vadd.f32 %v1330, 1.4214138
  %v1347 = vadd.f32 %v1331, 1.4214138
  %v1348 = vadd.f32 %v1332, 1.4214138
  %v1349 = vadd.f32 %v1333, 1.4214138
  %v1350 = vadd.f32 %v1334, 1.4214138
  %v1351 = vadd.f32 %v1335, 1.4214138
  %v1352 = vadd.f32 %v1336, 1.4214138
  %v1353 = vmul.f32 %v1337, %v1273
  %v1354 = vmul.f32 %v1338, %v1274
  %v1355 = vmul.f32 %v1339, %v1275
  %v1356 = vmul.f32 %v1340, %v1276
  %v1357 = vmul.f32 %v1341, %v1277
  %v1358 = vmul.f32 %v1342, %v1278
  %v1359 = vmul.f32 %v1343, %v1279
  %v1360 = vmul.f32 %v1344, %v1280
  %v1361 = vmul.f32 %v1345, %v1281
  %v1362 = vmul.f32 %v1346, %v1282
  %v1363 = vmul.f32 %v1347, %v1283
  %v1364 = vmul.f32 %v1348, %v1284
  %v1365 = vmul.f32 %v1349, %v1285
  %v1366 = vmul.f32 %v1350, %v1286
  %v1367 = vmul.f32 %v1351, %v1287
  %v1368 = vmul.f32 %v1352, %v1288
  %v1369 = vadd.f32 %v1353, -0.28449672
  %v1370 = vadd.f32 %v1354, -0.28449672
  %v1371 = vadd.f32 %v1355, -0.28449672
  %v1372 = vadd.f32 %v1356, -0.28449672
  %v1373 = vadd.f32 %v1357, -0.28449672
  %v1374 = vadd.f32 %v1358, -0.28449672
  %v1375 = vadd.f32 %v1359, -0.28449672
  %v1376 = vadd.f32 %v1360, -0.28449672
  %v1377 = vadd.f32 %v1361, -0.28449672
  %v1378 = vadd.f32 %v1362, -0.28449672
  %v1379 = vadd.f32 %v1363, -0.28449672
  %v1380 = vadd.f32 %v1364, -0.28449672
  %v1381 = vadd.f32 %v1365, -0.28449672
  %v1382 = vadd.f32 %v1366, -0.28449672
  %v1383 = vadd.f32 %v1367, -0.28449672
  %v1384 = vadd.f32 %v1368, -0.28449672
  %v1385 = vmul.f32 %v1369, %v1273
  %v1386 = vmul.f32 %v1370, %v1274
  %v1387 = vmul.f32 %v1371, %v1275
  %v1388 = vmul.f32 %v1372, %v1276
  %v1389 = vmul.f32 %v1373, %v1277
  %v1390 = vmul.f32 %v1374, %v1278
  %v1391 = vmul.f32 %v1375, %v1279
  %v1392 = vmul.f32 %v1376, %v1280
  %v1393 = vmul.f32 %v1377, %v1281
  %v1394 = vmul.f32 %v1378, %v1282
  %v1395 = vmul.f32 %v1379, %v1283
  %v1396 = vmul.f32 %v1380, %v1284
  %v1397 = vmul.f32 %v1381, %v1285
  %v1398 = vmul.f32 %v1382, %v1286
  %v1399 = vmul.f32 %v1383, %v1287
  %v1400 = vmul.f32 %v1384, %v1288
  %v1401 = vadd.f32 %v1385, 0.2548296
  %v1402 = vadd.f32 %v1386, 0.2548296
  %v1403 = vadd.f32 %v1387, 0.2548296
  %v1404 = vadd.f32 %v1388, 0.2548296
  %v1405 = vadd.f32 %v1389, 0.2548296
  %v1406 = vadd.f32 %v1390, 0.2548296
  %v1407 = vadd.f32 %v1391, 0.2548296
  %v1408 = vadd.f32 %v1392, 0.2548296
  %v1409 = vadd.f32 %v1393, 0.2548296
  %v1410 = vadd.f32 %v1394, 0.2548296
  %v1411 = vadd.f32 %v1395, 0.2548296
  %v1412 = vadd.f32 %v1396, 0.2548296
  %v1413 = vadd.f32 %v1397, 0.2548296
  %v1414 = vadd.f32 %v1398, 0.2548296
  %v1415 = vadd.f32 %v1399, 0.2548296
  %v1416 = vadd.f32 %v1400, 0.2548296
  %v1417 = vmul.f32 %v1401, %v1273
  %v1418 = vmul.f32 %v1402, %v1274
  %v1419 = vmul.f32 %v1403, %v1275
  %v1420 = vmul.f32 %v1404, %v1276
  %v1421 = vmul.f32 %v1405, %v1277
  %v1422 = vmul.f32 %v1406, %v1278
  %v1423 = vmul.f32 %v1407, %v1279
  %v1424 = vmul.f32 %v1408, %v1280
  %v1425 = vmul.f32 %v1409, %v1281
  %v1426 = vmul.f32 %v1410, %v1282
  %v1427 = vmul.f32 %v1411, %v1283
  %v1428 = vmul.f32 %v1412, %v1284
  %v1429 = vmul.f32 %v1413, %v1285
  %v1430 = vmul.f32 %v1414, %v1286
  %v1431 = vmul.f32 %v1415, %v1287
  %v1432 = vmul.f32 %v1416, %v1288
  %v1433 = vsub.f32 0.0, %v1225
  %v1434 = vsub.f32 0.0, %v1226
  %v1435 = vsub.f32 0.0, %v1227
  %v1436 = vsub.f32 0.0, %v1228
  %v1437 = vsub.f32 0.0, %v1229
  %v1438 = vsub.f32 0.0, %v1230
  %v1439 = vsub.f32 0.0, %v1231
  %v1440 = vsub.f32 0.0, %v1232
  %v1441 = vsub.f32 0.0, %v1233
  %v1442 = vsub.f32 0.0, %v1234
  %v1443 = vsub.f32 0.0, %v1235
  %v1444 = vsub.f32 0.0, %v1236
  %v1445 = vsub.f32 0.0, %v1237
  %v1446 = vsub.f32 0.0, %v1238
  %v1447 = vsub.f32 0.0, %v1239
  %v1448 = vsub.f32 0.0, %v1240
  %v1449 = vmul.f32 %v1433, %v1225
  %v1450 = vmul.f32 %v1434, %v1226
  %v1451 = vmul.f32 %v1435, %v1227
  %v1452 = vmul.f32 %v1436, %v1228
  %v1453 = vmul.f32 %v1437, %v1229
  %v1454 = vmul.f32 %v1438, %v1230
  %v1455 = vmul.f32 %v1439, %v1231
  %v1456 = vmul.f32 %v1440, %v1232
  %v1457 = vmul.f32 %v1441, %v1233
  %v1458 = vmul.f32 %v1442, %v1234
  %v1459 = vmul.f32 %v1443, %v1235
  %v1460 = vmul.f32 %v1444, %v1236
  %v1461 = vmul.f32 %v1445, %v1237
  %v1462 = vmul.f32 %v1446, %v1238
  %v1463 = vmul.f32 %v1447, %v1239
  %v1464 = vmul.f32 %v1448, %v1240
  %v1465 = vmul.f32 %v1449, 1.442695
  %v1466 = vpow.pop %v1465
  %v1467 = vmul.f32 %v1450, 1.442695
  %v1468 = vpow.pop %v1467
  %v1469 = vmul.f32 %v1451, 1.442695
  %v1470 = vpow.pop %v1469
  %v1471 = vmul.f32 %v1452, 1.442695
  %v1472 = vpow.pop %v1471
  %v1473 = vmul.f32 %v1453, 1.442695
  %v1474 = vpow.pop %v1473
  %v1475 = vmul.f32 %v1454, 1.442695
  %v1476 = vpow.pop %v1475
  %v1477 = vmul.f32 %v1455, 1.442695
  %v1478 = vpow.pop %v1477
  %v1479 = vmul.f32 %v1456, 1.442695
  %v1480 = vpow.pop %v1479
  %v1481 = vmul.f32 %v1457, 1.442695
  %v1482 = vpow.pop %v1481
  %v1483 = vmul.f32 %v1458, 1.442695
  %v1484 = vpow.pop %v1483
  %v1485 = vmul.f32 %v1459, 1.442695
  %v1486 = vpow.pop %v1485
  %v1487 = vmul.f32 %v1460, 1.442695
  %v1488 = vpow.pop %v1487
  %v1489 = vmul.f32 %v1461, 1.442695
  %v1490 = vpow.pop %v1489
  %v1491 = vmul.f32 %v1462, 1.442695
  %v1492 = vpow.pop %v1491
  %v1493 = vmul.f32 %v1463, 1.442695
  %v1494 = vpow.pop %v1493
  %v1495 = vmul.f32 %v1464, 1.442695
  %v1496 = vpow.pop %v1495
  %v1497 = vmul.f32 %v1417, %v1466
  %v1498 = vmul.f32 %v1418, %v1468
  %v1499 = vmul.f32 %v1419, %v1470
  %v1500 = vmul.f32 %v1420, %v1472
  %v1501 = vmul.f32 %v1421, %v1474
  %v1502 = vmul.f32 %v1422, %v1476
  %v1503 = vmul.f32 %v1423, %v1478
  %v1504 = vmul.f32 %v1424, %v1480
  %v1505 = vmul.f32 %v1425, %v1482
  %v1506 = vmul.f32 %v1426, %v1484
  %v1507 = vmul.f32 %v1427, %v1486
  %v1508 = vmul.f32 %v1428, %v1488
  %v1509 = vmul.f32 %v1429, %v1490
  %v1510 = vmul.f32 %v1430, %v1492
  %v1511 = vmul.f32 %v1431, %v1494
  %v1512 = vmul.f32 %v1432, %v1496
  %v1513 = vsub.f32 1.0, %v1497
  %v1514 = vsub.f32 1.0, %v1498
  %v1515 = vsub.f32 1.0, %v1499
  %v1516 = vsub.f32 1.0, %v1500
  %v1517 = vsub.f32 1.0, %v1501
  %v1518 = vsub.f32 1.0, %v1502
  %v1519 = vsub.f32 1.0, %v1503
  %v1520 = vsub.f32 1.0, %v1504
  %v1521 = vsub.f32 1.0, %v1505
  %v1522 = vsub.f32 1.0, %v1506
  %v1523 = vsub.f32 1.0, %v1507
  %v1524 = vsub.f32 1.0, %v1508
  %v1525 = vsub.f32 1.0, %v1509
  %v1526 = vsub.f32 1.0, %v1510
  %v1527 = vsub.f32 1.0, %v1511
  %v1528 = vsub.f32 1.0, %v1512
  %vm1529 = vcmp.ge.f32.partialorder %v1147, 0.0
  %vm1530 = vcmp.ge.f32.partialorder %v1150, 0.0
  %vm1531 = vcmp.ge.f32.partialorder %v1155, 0.0
  %vm1532 = vcmp.ge.f32.partialorder %v1158, 0.0
  %vm1533 = vcmp.ge.f32.partialorder %v1163, 0.0
  %vm1534 = vcmp.ge.f32.partialorder %v1166, 0.0
  %vm1535 = vcmp.ge.f32.partialorder %v1171, 0.0
  %vm1536 = vcmp.ge.f32.partialorder %v1174, 0.0
  %vm1537 = vcmp.ge.f32.partialorder %v1179, 0.0
  %vm1538 = vcmp.ge.f32.partialorder %v1182, 0.0
  %vm1539 = vcmp.ge.f32.partialorder %v1187, 0.0
  %vm1540 = vcmp.ge.f32.partialorder %v1190, 0.0
  %vm1541 = vcmp.ge.f32.partialorder %v1195, 0.0
  %vm1542 = vcmp.ge.f32.partialorder %v1198, 0.0
  %vm1543 = vcmp.ge.f32.partialorder %v1203, 0.0
  %vm1544 = vcmp.ge.f32.partialorder %v1206, 0.0
  %v1545 = vsub.f32 0.0, %v1513
  %v1546 = vsub.f32 0.0, %v1514
  %v1547 = vsub.f32 0.0, %v1515
  %v1548 = vsub.f32 0.0, %v1516
  %v1549 = vsub.f32 0.0, %v1517
  %v1550 = vsub.f32 0.0, %v1518
  %v1551 = vsub.f32 0.0, %v1519
  %v1552 = vsub.f32 0.0, %v1520
  %v1553 = vsub.f32 0.0, %v1521
  %v1554 = vsub.f32 0.0, %v1522
  %v1555 = vsub.f32 0.0, %v1523
  %v1556 = vsub.f32 0.0, %v1524
  %v1557 = vsub.f32 0.0, %v1525
  %v1558 = vsub.f32 0.0, %v1526
  %v1559 = vsub.f32 0.0, %v1527
  %v1560 = vsub.f32 0.0, %v1528
  %v1561 = vsel %vm1529, %v1513, %v1545
  %v1562 = vsel %vm1530, %v1514, %v1546
  %v1563 = vsel %vm1531, %v1515, %v1547
  %v1564 = vsel %vm1532, %v1516, %v1548
  %v1565 = vsel %vm1533, %v1517, %v1549
  %v1566 = vsel %vm1534, %v1518, %v1550
  %v1567 = vsel %vm1535, %v1519, %v1551
  %v1568 = vsel %vm1536, %v1520, %v1552
  %v1569 = vsel %vm1537, %v1521, %v1553
  %v1570 = vsel %vm1538, %v1522, %v1554
  %v1571 = vsel %vm1539, %v1523, %v1555
  %v1572 = vsel %vm1540, %v1524, %v1556
  %v1573 = vsel %vm1541, %v1525, %v1557
  %v1574 = vsel %vm1542, %v1526, %v1558
  %v1575 = vsel %vm1543, %v1527, %v1559
  %v1576 = vsel %vm1544, %v1528, %v1560
  %v1577 = vadd.f32 %v1561, 1.0
  %v1578 = vadd.f32 %v1562, 1.0
  %v1579 = vadd.f32 %v1563, 1.0
  %v1580 = vadd.f32 %v1564, 1.0
  %v1581 = vadd.f32 %v1565, 1.0
  %v1582 = vadd.f32 %v1566, 1.0
  %v1583 = vadd.f32 %v1567, 1.0
  %v1584 = vadd.f32 %v1568, 1.0
  %v1585 = vadd.f32 %v1569, 1.0
  %v1586 = vadd.f32 %v1570, 1.0
  %v1587 = vadd.f32 %v1571, 1.0
  %v1588 = vadd.f32 %v1572, 1.0
  %v1589 = vadd.f32 %v1573, 1.0
  %v1590 = vadd.f32 %v1574, 1.0
  %v1591 = vadd.f32 %v1575, 1.0
  %v1592 = vadd.f32 %v1576, 1.0
  %v1593 = vmul.f32 %v1577, 0.5
  %v1594 = vmul.f32 %v1578, 0.5
  %v1595 = vmul.f32 %v1579, 0.5
  %v1596 = vmul.f32 %v1580, 0.5
  %v1597 = vmul.f32 %v1581, 0.5
  %v1598 = vmul.f32 %v1582, 0.5
  %v1599 = vmul.f32 %v1583, 0.5
  %v1600 = vmul.f32 %v1584, 0.5
  %v1601 = vmul.f32 %v1585, 0.5
  %v1602 = vmul.f32 %v1586, 0.5
  %v1603 = vmul.f32 %v1587, 0.5
  %v1604 = vmul.f32 %v1588, 0.5
  %v1605 = vmul.f32 %v1589, 0.5
  %v1606 = vmul.f32 %v1590, 0.5
  %v1607 = vmul.f32 %v1591, 0.5
  %v1608 = vmul.f32 %v1592, 0.5
  %v1609 = vmul.f32 %v1147, %v1593
  %v1610 = vmul.f32 %v1150, %v1594
  %v1611 = vmul.f32 %v1155, %v1595
  %v1612 = vmul.f32 %v1158, %v1596
  %v1613 = vmul.f32 %v1163, %v1597
  %v1614 = vmul.f32 %v1166, %v1598
  %v1615 = vmul.f32 %v1171, %v1599
  %v1616 = vmul.f32 %v1174, %v1600
  %v1617 = vmul.f32 %v1179, %v1601
  %v1618 = vmul.f32 %v1182, %v1602
  %v1619 = vmul.f32 %v1187, %v1603
  %v1620 = vmul.f32 %v1190, %v1604
  %v1621 = vmul.f32 %v1195, %v1605
  %v1622 = vmul.f32 %v1198, %v1606
  %v1623 = vmul.f32 %v1203, %v1607
  %v1624 = vmul.f32 %v1206, %v1608
  %v1625 = vpack.c.bf16 %v1610, %v1609
  %v1626 = vpack.c.bf16 %v1612, %v1611
  %v1627 = vpack.c.bf16 %v1614, %v1613
  %v1628 = vpack.c.bf16 %v1616, %v1615
  %v1629 = vpack.c.bf16 %v1618, %v1617
  %v1630 = vpack.c.bf16 %v1620, %v1619
  %v1631 = vpack.c.bf16 %v1622, %v1621
  %v1632 = vpack.c.bf16 %v1624, %v1623
  %v1633 = vld [vmem:[%s6] sm:$0xf]
  %v1634 = vld [vmem:[%s6 + $0x4] sm:$0xf]
  %v1635 = vld [vmem:[%s6 + $0x8] sm:$0xf]
  %v1636 = vld [vmem:[%s6 + $0xc] sm:$0xf]
  %v1637 = vld [vmem:[%s1 + $0x180] sm:$0xff]
  %v1638 = vld [vmem:[%s1 + $0x188] sm:$0xff]
  %v1639 = vld [vmem:[%s1 + $0x190] sm:$0xff]
  %v1640 = vld [vmem:[%s1 + $0x198] sm:$0xff]
  %1642 = vset.pattern.permute.xlu0 0
  %1643 = vperm.xlu0 %1642, %v1637
  %v1644 = vpop.permute.xlu0 %1643
  %1647 = vset.pattern.permute.xlu0 0
  %1648 = vperm.xlu0 %1647, %v1638
  %v1649 = vpop.permute.xlu0 %1648
  %1652 = vset.pattern.permute.xlu0 0
  %1653 = vperm.xlu0 %1652, %v1639
  %v1654 = vpop.permute.xlu0 %1653
  %1657 = vset.pattern.permute.xlu0 0
  %1658 = vperm.xlu0 %1657, %v1640
  %v1659 = vpop.permute.xlu0 %1658
  %v1665 = vunpack.c.l.b16 %v1633
  %v1666 = vunpack.c.l.b16 %v1634
  %v1667 = vunpack.c.l.b16 %v1635
  %v1668 = vunpack.c.l.b16 %v1636
  %v1669 = vpack.c.b16 %v1666, %v1665
  %v1670 = vpack.c.b16 %v1668, %v1667
  %1673 = vmatprep.subr.bf16.mxu0 0
  %1674 = vmatpush1.bf16.msra.mxu0 %v1625
  %1675 = vmatprep.subr.bf16.mxu0 0
  %1676 = vmatpush1.bf16.msra.mxu0 %v1626
  %1677 = vmatprep.subr.bf16.mxu0 0
  %1678 = vmatpush1.bf16.msra.mxu0 %v1627
  %1679 = vmatprep.subr.bf16.mxu0 0
  %1680 = vmatpush1.bf16.msra.mxu0 %v1628
  %1681 = vmatprep.subr.bf16.mxu0 0
  %1682 = vmatpush1.bf16.msra.mxu0 %v1629
  %1683 = vmatprep.subr.bf16.mxu0 0
  %1684 = vmatpush1.bf16.msra.mxu0 %v1630
  %1685 = vmatprep.subr.bf16.mxu0 0
  %1686 = vmatpush1.bf16.msra.mxu0 %v1631
  %1687 = vmatprep.subr.bf16.mxu0 0
  %1688 = vmatpush1.bf16.msra.mxu0 %v1632
  %1689 = vmatprep.subr.bf16.mxu0 0
  %1690 = vmatpush1.bf16.msra.mxu0 0
  %1691 = vmatprep.subr.bf16.mxu0 0
  %1692 = vmatpush1.bf16.msra.mxu0 0
  %1693 = vmatprep.subr.bf16.mxu0 0
  %1694 = vmatpush1.bf16.msra.mxu0 0
  %1695 = vmatprep.subr.bf16.mxu0 0
  %1696 = vmatpush1.bf16.msra.mxu0 0
  %1697 = vmatprep.subr.bf16.mxu0 0
  %1698 = vmatpush1.bf16.msra.mxu0 0
  %1699 = vmatprep.subr.bf16.mxu0 0
  %1700 = vmatpush1.bf16.msra.mxu0 0
  %1701 = vmatprep.subr.bf16.mxu0 0
  %1702 = vmatpush1.bf16.msra.mxu0 0
  %1703 = vmatprep.subr.bf16.mxu0 0
  %1704 = vmatpush1.bf16.msra.mxu0 0
  %1705 = vmatprep.mubr.bf16.mxu0 0
  %1706 = vmatmul.mubr.bf16.gmra.mrb[0].mxu0 %v1669
  %v1707 = vpop.f32.mrb[0].mxu0
  %v1708 = vadd.f32 %v1644, %v1707
  %v1709 = vpop.f32.mrb[0].mxu0
  %v1710 = vpop.f32.mrb[0].mxu0
  %v1711 = vadd.f32 %v1649, %v1710
  %v1712 = vpop.f32.mrb[0].mxu0
  %1713 = vmatprep.mubr.bf16.mxu0 0
  %1714 = vmatmul.mubr.bf16.gmra.mrb[0].mxu0 %v1670
  %v1715 = vpop.f32.mrb[0].mxu0
  %v1716 = vadd.f32 %v1654, %v1715
  %v1717 = vpop.f32.mrb[0].mxu0
  %v1718 = vpop.f32.mrb[0].mxu0
  %v1719 = vadd.f32 %v1659, %v1718
  %v1720 = vpop.f32.mrb[0].mxu0
  %1721 = vdwg.mxu0
  %v1722 = vadd.f32 %v840, %v1708
  %v1723 = vadd.f32 %v841, %v1711
  %v1724 = vadd.f32 %v842, %v1716
  %v1725 = vadd.f32 %v843, %v1719
  %1726 = vst [vmem:[%s7] sm:$0xff] %v1722
  %1727 = vst [vmem:[%s7 + $0x8] sm:$0xff] %v1723
  %1728 = vst [vmem:[%s7 + $0x10] sm:$0xff] %v1724
  %1729 = vst [vmem:[%s7 + $0x18] sm:$0xff] %v1725
  // Predicated region
  $region37: #{swin_block_forward.1} parent=0 // pred_check
    _
  $region38: #{swin_block_forward.1} parent=0 // pred_check_branch
    %1731 = sbr.rel (0) target = $region40
  $region39: #{swin_block_forward.1} parent=0 // pred_region
    _
  $region40: #{swin_block_forward.1} parent=0 // pred_fallthru
    _
  // Predicated region
  $region41: #{swin_block_forward.1} parent=0 // pred_check
    _
  $region42: #{swin_block_forward.1} parent=0 // pred_check_branch
    %1733 = sbr.rel (0) target = $region44
  $region43: #{swin_block_forward.1} parent=0 // pred_region
    _
  $region44: #{swin_block_forward.1} parent=0 // pred_fallthru
    _

</llo_original>
